<compile_context>
chip_gen: v6e
topology: v6e:2x2x1
jax: 0.10.0
libtpu: 0.0.40
codegen_flags: <defaults>
</compile_context>

<pallas_src>
import jax
import jax.numpy as jnp
from jax import lax
from jax.experimental import pallas as pl
from jax.experimental.pallas import tpu as pltpu


# ---------------------------------------------------------------------------
# Pallas kernel
# ---------------------------------------------------------------------------
def make_mv2_kernel(W, L, use_res, matmul_dtype, dw_dtype):
    """Fused MV2Block kernel (stride=1, expansion>1 path), channel-major layout.

    Activations are (C, L) with L = G*H*W in the lane dimension.  The 3x3
    depthwise conv is done with pltpu.roll (XLU) + precomputed per-lane edge
    masks; hierarchical masking shares the row mask between the three taps of
    each kernel row.
    """

    def kernel(mask_ref, x_ref, w1_ref, b1_ref, wdw_ref, bdw_ref, w3_ref,
               b3_ref, o_ref):
        x_mm = x_ref[0].astype(matmul_dtype)                 # (Cin, L)

        # --- 1x1 pointwise expand conv (+ folded BN) + SiLU --------------------
        # (hidden, Cin) @ (Cin, L) -> (hidden, L): lane dim is L (dense).
        h = jnp.dot(w1_ref[...], x_mm, preferred_element_type=jnp.float32)
        h = h + b1_ref[...]                                  # (hidden, 1) bias
        h = h * jax.nn.sigmoid(h)                            # SiLU (EUP)

        # --- 3x3 depthwise conv, pad=1, stride=1 (+ folded BN) + SiLU ----------
        # Precomputed per-lane edge masks (int32 0/1): rows = [up, down, left, right].
        m = mask_ref[...] != 0                               # (4, L) bool, tiny
        up_ok, dn_ok = m[0:1], m[1:2]
        left_ok, right_ok = m[2:3], m[3:4]

        hc = h.astype(dw_dtype)                              # bf16 tap math on v6e/v7x
        wdw = wdw_ref[...]                                   # (hidden, 9), dw_dtype

        # Hierarchical masking: row-masked vertical bases once (2 rolls, 2 selects),
        # then the 6 horizontal taps only need the column mask.  8 XLU rolls total.
        base_up = jnp.where(up_ok, pltpu.roll(hc, W, axis=1), 0.0)      # h[p - W]
        base_dn = jnp.where(dn_ok, pltpu.roll(hc, L - W, axis=1), 0.0)  # h[p + W]

        acc = hc * wdw[:, 4:5] + bdw_ref[...]                # centre tap + folded-BN bias
        acc = acc + base_up * wdw[:, 1:2]                    # (dy=-1, dx=0)
        acc = acc + base_dn * wdw[:, 7:8]                    # (dy=+1, dx=0)
        for a, base in ((0, base_up), (1, hc), (2, base_dn)):
            lt = jnp.where(left_ok, pltpu.roll(base, 1, axis=1), 0.0)       # dx=-1
            rt = jnp.where(right_ok, pltpu.roll(base, L - 1, axis=1), 0.0)  # dx=+1
            acc = acc + lt * wdw[:, 3 * a:3 * a + 1]
            acc = acc + rt * wdw[:, 3 * a + 2:3 * a + 3]
        act = acc * jax.nn.sigmoid(acc)                      # SiLU (EUP)

        # --- 1x1 pointwise project conv (+ folded BN, no activation) -----------
        y = jnp.dot(w3_ref[...], act.astype(matmul_dtype),
                    preferred_element_type=jnp.float32)      # (Cout, L)
        y = y + b3_ref[...]
        if use_res:
            y = y + x_ref[0].astype(jnp.float32)             # residual (Cin == Cout)

        o_ref[0] = y.astype(o_ref.dtype)                     # lane-dense store

    return kernel


# ---------------------------------------------------------------------------
# Wrapper: NCHW in / NCHW out, folded-BN params, pallas_call
# ---------------------------------------------------------------------------
def _select_batch_lanes(N, HW):
    """Smallest G (dividing N) whose lane extent G*HW is a multiple of 128;
    otherwise pack up to ~2K lanes to amortise per-step overhead."""
    for g in range(1, N + 1):
        if N % g == 0 and (g * HW) % 128 == 0:
            return g
    best = 1
    for g in range(1, N + 1):
        if N % g == 0 and g * HW <= 2048:
            best = g
    return best


def mv2block_pallas(x_nchw, folded, *, stride=1, use_res=True,
                    matmul_dtype=jnp.float32, dw_dtype=jnp.float32,
                    io_dtype=jnp.float32, batch_lanes=None):
    # TODO(synk): stride=2 and the expansion==1 variant of MV2Block are not
    # wired into the kernel; this covers the default stride=1, expansion>1 path.
    assert stride == 1, "only the stride=1 path is implemented in-kernel"
    w1, b1, wdw, bdw, w3, b3 = folded
    N, Cin, H, W = x_nchw.shape
    hidden = w1.shape[0]
    Cout = w3.shape[0]
    HW = H * W
    if use_res:
        assert Cin == Cout, "residual path requires ch_in == ch_out"

    # --- pack G batch images into the lane dimension -------------------------
    G = _select_batch_lanes(N, HW) if batch_lanes is None else int(batch_lanes)
    assert N % G == 0, "batch_lanes must divide the batch size"
    NG = N // G
    L = G * HW

    x = x_nchw.reshape(N, Cin, HW)
    if G > 1:
        # (NG, G, Cin, HW) -> (NG, Cin, G, HW): one cheap wrapper-side transpose
        # buys lane-dense, unmasked stores in-kernel.
        x = x.reshape(NG, G, Cin, HW).transpose(0, 2, 1, 3)
    x_flat = x.reshape(NG, Cin, L).astype(io_dtype)

    # --- precomputed per-lane edge masks (removes per-step integer div/mod) --
    pos = jnp.arange(L, dtype=jnp.int32)
    ip = pos % HW                                    # per-image pixel index
    row, col = ip // W, ip % W
    masks = jnp.stack([row >= 1, row <= H - 2,
                       col >= 1, col <= W - 2]).astype(jnp.int32)   # (4, L)

    # --- dtypes (MXU operands / depthwise math / biases) ---------------------
    w1 = w1.astype(matmul_dtype)
    w3 = w3.astype(matmul_dtype)
    b1 = b1.astype(jnp.float32)
    b3 = b3.astype(jnp.float32)
    wdw = wdw.astype(dw_dtype)
    bdw = bdw.astype(dw_dtype)

    io_b = jnp.dtype(io_dtype).itemsize
    dw_b = jnp.dtype(dw_dtype).itemsize
    mm_b = jnp.dtype(matmul_dtype).itemsize

    # Per-step VMEM need: double-buffered I/O + weights + live intermediates.
    per_step = (2 * (Cin + Cout) * L * io_b                     # x / out (2 bufs each)
                + 2 * 4 * L * 4                                 # edge masks
                + 2 * ((hidden * Cin + Cout * hidden) * mm_b
                       + hidden * 10 * dw_b + (hidden + Cout) * 4)
                + hidden * L * (2 * 4 + 5 * dw_b)               # h/act + acc/bases/taps
                + Cout * L * 4)                                 # y
    # Cap below v7x's 64 MiB physical VMEM per TensorCore (v5e/v6e have 128 MiB).
    vmem_limit = int(min(max(2 * per_step, 8 * 2 ** 20), 48 * 2 ** 20))

    cost = pl.CostEstimate(
        flops=int(N * HW * 2 * (hidden * Cin + Cout * hidden + 9 * hidden + 4 * hidden)),
        transcendentals=int(2 * N * HW * hidden),
        bytes_accessed=int(N * HW * (Cin + Cout) * io_b
                           + (hidden * Cin + Cout * hidden) * mm_b
                           + hidden * 10 * dw_b + (hidden + Cout) * 4 + 4 * L * 4),
    )

    # TODO(synk): weight BlockSpecs still get the default 2 pipeline buffers;
    # for real-size weights (e.g. 960x160) switch them to pipeline_mode=pl.Buffered(1)
    # to save VMEM headroom on v7x.
    kernel = make_mv2_kernel(W, L, use_res, matmul_dtype, dw_dtype)
    out_flat = pl.pallas_call(
        kernel,
        out_shape=jax.ShapeDtypeStruct((NG, Cout, L), io_dtype),
        grid_spec=pltpu.PrefetchScalarGridSpec(
            num_scalar_prefetch=0,
            grid=(NG,),
            in_specs=[
                pl.BlockSpec((4, L), lambda n: (0, 0)),            # edge masks
                pl.BlockSpec((1, Cin, L), lambda n: (n, 0, 0)),    # x
                pl.BlockSpec((hidden, Cin), lambda n: (0, 0)),     # w1
                pl.BlockSpec((hidden, 1), lambda n: (0, 0)),       # b1
                pl.BlockSpec((hidden, 9), lambda n: (0, 0)),       # wdw
                pl.BlockSpec((hidden, 1), lambda n: (0, 0)),       # bdw
                pl.BlockSpec((Cout, hidden), lambda n: (0, 0)),    # w3
                pl.BlockSpec((Cout, 1), lambda n: (0, 0)),         # b3
            ],
            out_specs=pl.BlockSpec((1, Cout, L), lambda n: (n, 0, 0)),
        ),
        compiler_params=pltpu.CompilerParams(
            dimension_semantics=("parallel",),
            vmem_limit_bytes=vmem_limit,
        ),
        cost_estimate=cost,
    )(masks, x_flat, w1, b1, wdw, bdw, w3, b3)

    # TODO(synk): for big feature maps (e.g. 112x112 with hidden up to 576) add a
    # spatial row-block grid axis (1-row halo for the 3x3 depthwise, block-relative
    # row masks) so per-step intermediates fit v7x's 64 MiB VMEM; at these toy sizes
    # a whole image per step fits comfortably.
    out = out_flat
    if G > 1:
        out = out.reshape(NG, Cout, G, HW).transpose(0, 2, 1, 3)
    return out.reshape(N, Cout, H, W)


# ---------------------------------------------------------------------------
# Parameter construction (deterministic) and BN folding
# ---------------------------------------------------------------------------
def init_params(key, ch_in, ch_out, expansion=4):
    hidden = int(ch_in * expansion)
    ks = jax.random.split(key, 6)

    def bn_params(k, c):
        a, b = jax.random.split(k)
        gamma = 1.0 + 0.1 * jnp.arange(c, dtype=jnp.float32)
        beta = 0.05 * jnp.arange(c, dtype=jnp.float32)
        mean = 0.1 * jax.random.normal(a, (c,), jnp.float32)
        var = 0.5 + jnp.abs(jax.random.normal(b, (c,), jnp.float32))
        return gamma, beta, mean, var

    params = dict(
        w1_pt=0.3 * jax.random.normal(ks[0], (hidden, ch_in, 1, 1), jnp.float32),
        wdw_pt=0.3 * jax.random.normal(ks[1], (hidden, 1, 3, 3), jnp.float32),
        w3_pt=0.3 * jax.random.normal(ks[2], (ch_out, hidden, 1, 1), jnp.float32),
        bn1=bn_params(ks[3], hidden),
        bn2=bn_params(ks[4], hidden),
        bn3=bn_params(ks[5], ch_out),
    )
    return params, hidden


def fold_params(params, eps=1e-5):
    """Fold inference BatchNorm into conv weights/biases, channel-major layout."""
    def scale_shift(bn):
        gamma, beta, mean, var = bn
        s = gamma / jnp.sqrt(var + eps)
        return s, beta - mean * s

    s1, sh1 = scale_shift(params["bn1"])
    s2, sh2 = scale_shift(params["bn2"])
    s3, sh3 = scale_shift(params["bn3"])

    hidden = params["w1_pt"].shape[0]
    w1 = params["w1_pt"][:, :, 0, 0] * s1[:, None]           # (hidden, Cin)
    b1 = sh1[:, None]                                         # (hidden, 1)
    wdw = params["wdw_pt"][:, 0].reshape(hidden, 9) * s2[:, None]
    bdw = sh2[:, None]                                        # (hidden, 1)
    w3 = params["w3_pt"][:, :, 0, 0] * s3[:, None]            # (Cout, hidden)
    b3 = sh3[:, None]                                         # (Cout, 1)
    return (w1, b1, wdw, bdw, w3, b3)


# ---------------------------------------------------------------------------
# Pure-JAX reference (mirrors the PyTorch module, NCHW) for validation
# ---------------------------------------------------------------------------
def ref_forward(x, params, *, stride=1, use_res=True, eps=1e-5):
    def bn(y, bnp):
        gamma, beta, mean, var = bnp
        return ((y - mean[None, :, None, None])
                / jnp.sqrt(var + eps)[None, :, None, None]
                * gamma[None, :, None, None] + beta[None, :, None, None])

    dn = ("NCHW", "OIHW", "NCHW")
    hidden = params["w1_pt"].shape[0]

    y = lax.conv_general_dilated(x, params["w1_pt"], (1, 1), "VALID",
                                 dimension_numbers=dn)
    y = bn(y, params["bn1"])
    y = y * jax.nn.sigmoid(y)

    y = lax.conv_general_dilated(y, params["wdw_pt"], (stride, stride),
                                 ((1, 1), (1, 1)),
                                 feature_group_count=hidden,
                                 dimension_numbers=dn)
    y = bn(y, params["bn2"])
    y = y * jax.nn.sigmoid(y)

    y = lax.conv_general_dilated(y, params["w3_pt"], (1, 1), "VALID",
                                 dimension_numbers=dn)
    y = bn(y, params["bn3"])
    return x + y if use_res else y


# ---------------------------------------------------------------------------
if __name__ == "__main__":
    key = jax.random.PRNGKey(0)
    k_x, k_p = jax.random.split(key)

    # MV2Block(ch_in=4, ch_out=4, stride=1, expansion=4) -> use_res_connect=True
    N, C_IN, C_OUT, H, W = 2, 4, 4, 16, 16
    STRIDE, EXPANSION = 1, 4
    USE_RES = (STRIDE == 1) and (C_IN == C_OUT)

    x = jax.random.normal(k_x, (N, C_IN, H, W), jnp.float32)     # NCHW like PyTorch
    params, hidden = init_params(k_p, C_IN, C_OUT, EXPANSION)
    folded = fold_params(params)

    ref = jax.block_until_ready(
        ref_forward(x, params, stride=STRIDE, use_res=USE_RES))

    # 1) all-f32 path (v5e-safe elementwise math): tight check.
    out = jax.block_until_ready(
        mv2block_pallas(x, folded, stride=STRIDE, use_res=USE_RES))
    assert out.shape == (N, C_OUT, H, W), out.shape
    assert jnp.allclose(out, ref, atol=1e-4, rtol=1e-4), (
        float(jnp.max(jnp.abs(out - ref))))

    # 2) batch-lane packing path (G=2): exercises the lane-packing transpose and
    #    the per-image edge masks (the config auto-selection would pick G=1 here).
    out_packed = jax.block_until_ready(
        mv2block_pallas(x, folded, stride=STRIDE, use_res=USE_RES, batch_lanes=2))
    assert jnp.allclose(out_packed, ref, atol=1e-4, rtol=1e-4), (
        float(jnp.max(jnp.abs(out_packed - ref))))

    # 3) v6e/v7x deployment config: bf16 MXU operands, bf16 depthwise tap math,
    #    bf16 activation I/O (halves HBM traffic).  Keep dw/io in f32 on v5e.
    out_bf16 = jax.block_until_ready(
        mv2block_pallas(x, folded, stride=STRIDE, use_res=USE_RES,
                        matmul_dtype=jnp.bfloat16, dw_dtype=jnp.bfloat16,
                        io_dtype=jnp.bfloat16))
    err = float(jnp.max(jnp.abs(out_bf16.astype(jnp.float32) - ref)))
    assert jnp.allclose(out_bf16.astype(jnp.float32), ref, atol=3e-1, rtol=3e-1), err

    print("KERNEL_OK")
</pallas_src>

<mosaic_0001>
module attributes {stable_mosaic.version = 11 : i64} {
  func.func @kernel(%arg0: i32, %arg1: memref<4x256xi32, #tpu.memory_space<vmem>>, %arg2: memref<1x4x256xf32, #tpu.memory_space<vmem>>, %arg3: memref<16x4xf32, #tpu.memory_space<vmem>>, %arg4: memref<16x1xf32, #tpu.memory_space<vmem>>, %arg5: memref<16x9xf32, #tpu.memory_space<vmem>>, %arg6: memref<16x1xf32, #tpu.memory_space<vmem>>, %arg7: memref<4x16xf32, #tpu.memory_space<vmem>>, %arg8: memref<4x1xf32, #tpu.memory_space<vmem>>, %arg9: memref<1x4x256xf32, #tpu.memory_space<vmem>>) attributes {dimension_semantics = [#tpu.dimension_semantics<parallel>], iteration_bounds = array<i64: 2>, scalar_prefetch = 0 : i64, scratch_operands = 0 : i64, tpu.core_type = #tpu.core_type<tc>, window_params = [{pipeline_mode = #tpu.pipeline_mode<synchronous>, transform_indices = @transform_0, window_bounds = array<i64: 4, 256>}, {transform_indices = @transform_1, window_bounds = array<i64: 1, 4, 256>}, {pipeline_mode = #tpu.pipeline_mode<synchronous>, transform_indices = @transform_2, window_bounds = array<i64: 16, 4>}, {pipeline_mode = #tpu.pipeline_mode<synchronous>, transform_indices = @transform_3, window_bounds = array<i64: 16, 1>}, {pipeline_mode = #tpu.pipeline_mode<synchronous>, transform_indices = @transform_4, window_bounds = array<i64: 16, 9>}, {pipeline_mode = #tpu.pipeline_mode<synchronous>, transform_indices = @transform_5, window_bounds = array<i64: 16, 1>}, {pipeline_mode = #tpu.pipeline_mode<synchronous>, transform_indices = @transform_6, window_bounds = array<i64: 4, 16>}, {pipeline_mode = #tpu.pipeline_mode<synchronous>, transform_indices = @transform_7, window_bounds = array<i64: 4, 1>}, {transform_indices = @transform_8, window_bounds = array<i64: 1, 4, 256>}]} {
    %c0 = arith.constant 0 : index
    %c0_0 = arith.constant 0 : index
    %c0_1 = arith.constant 0 : index
    %0 = vector.load %arg2[%c0, %c0_0, %c0_1] : memref<1x4x256xf32, #tpu.memory_space<vmem>>, vector<1x4x256xf32>
    %1 = vector.shape_cast %0 : vector<1x4x256xf32> to vector<4x256xf32>
    %c0_2 = arith.constant 0 : index
    %c0_3 = arith.constant 0 : index
    %2 = vector.load %arg3[%c0_2, %c0_3] : memref<16x4xf32, #tpu.memory_space<vmem>>, vector<16x4xf32>
    %cst = arith.constant dense<0.000000e+00> : vector<16x256xf32>
    %3 = tpu.matmul %2, %1, %cst {dimension_numbers = #tpu.dot_dimension_numbers<[1], [0], [0], [1], [0, 0, 1, 1], [], []>} : vector<16x4xf32>, vector<4x256xf32>, vector<16x256xf32> -> vector<16x256xf32>
    %c0_4 = arith.constant 0 : index
    %c0_5 = arith.constant 0 : index
    %4 = vector.load %arg4[%c0_4, %c0_5] : memref<16x1xf32, #tpu.memory_space<vmem>>, vector<16x1xf32>
    %5 = vector.broadcast %4 : vector<16x1xf32> to vector<16x256xf32>
    %6 = arith.addf %3, %5 : vector<16x256xf32>
    %7 = arith.negf %6 : vector<16x256xf32>
    %8 = math.exp %7 : vector<16x256xf32>
    %cst_6 = arith.constant 1.000000e+00 : f32
    %9 = vector.broadcast %cst_6 : f32 to vector<16x256xf32>
    %10 = arith.addf %9, %8 : vector<16x256xf32>
    %11 = arith.divf %9, %10 : vector<16x256xf32>
    %12 = arith.mulf %6, %11 : vector<16x256xf32>
    %c0_7 = arith.constant 0 : index
    %c0_8 = arith.constant 0 : index
    %13 = vector.load %arg1[%c0_7, %c0_8] : memref<4x256xi32, #tpu.memory_space<vmem>>, vector<4x256xi32>
    %c0_i32 = arith.constant 0 : i32
    %14 = vector.broadcast %c0_i32 : i32 to vector<4x256xi32>
    %15 = arith.cmpi ne, %13, %14 : vector<4x256xi32>
    %16 = vector.extract_strided_slice %15 {offsets = [0, 0], sizes = [1, 256], strides = [1, 1]} : vector<4x256xi1> to vector<1x256xi1>
    %17 = vector.extract_strided_slice %15 {offsets = [1, 0], sizes = [1, 256], strides = [1, 1]} : vector<4x256xi1> to vector<1x256xi1>
    %18 = vector.extract_strided_slice %15 {offsets = [2, 0], sizes = [1, 256], strides = [1, 1]} : vector<4x256xi1> to vector<1x256xi1>
    %19 = vector.extract_strided_slice %15 {offsets = [3, 0], sizes = [1, 256], strides = [1, 1]} : vector<4x256xi1> to vector<1x256xi1>
    %c0_9 = arith.constant 0 : index
    %c0_10 = arith.constant 0 : index
    %20 = vector.load %arg5[%c0_9, %c0_10] : memref<16x9xf32, #tpu.memory_space<vmem>>, vector<16x9xf32>
    %c16_i32 = arith.constant 16 : i32
    %21 = tpu.dynamic_rotate %12 by %c16_i32 dim 1 : vector<16x256xf32>, i32 -> vector<16x256xf32>
    %cst_11 = arith.constant 0.000000e+00 : f32
    %22 = vector.shape_cast %16 : vector<1x256xi1> to vector<1x256xi1>
    %23 = vector.broadcast %22 : vector<1x256xi1> to vector<16x256xi1>
    %24 = vector.broadcast %cst_11 : f32 to vector<16x256xf32>
    %25 = arith.select %23, %21, %24 : vector<16x256xi1>, vector<16x256xf32>
    %c240_i32 = arith.constant 240 : i32
    %26 = tpu.dynamic_rotate %12 by %c240_i32 dim 1 : vector<16x256xf32>, i32 -> vector<16x256xf32>
    %cst_12 = arith.constant 0.000000e+00 : f32
    %27 = vector.shape_cast %17 : vector<1x256xi1> to vector<1x256xi1>
    %28 = vector.broadcast %27 : vector<1x256xi1> to vector<16x256xi1>
    %29 = vector.broadcast %cst_12 : f32 to vector<16x256xf32>
    %30 = arith.select %28, %26, %29 : vector<16x256xi1>, vector<16x256xf32>
    %31 = vector.extract_strided_slice %20 {offsets = [0, 4], sizes = [16, 1], strides = [1, 1]} : vector<16x9xf32> to vector<16x1xf32>
    %32 = vector.broadcast %31 : vector<16x1xf32> to vector<16x256xf32>
    %33 = arith.mulf %12, %32 : vector<16x256xf32>
    %c0_13 = arith.constant 0 : index
    %c0_14 = arith.constant 0 : index
    %34 = vector.load %arg6[%c0_13, %c0_14] : memref<16x1xf32, #tpu.memory_space<vmem>>, vector<16x1xf32>
    %35 = vector.broadcast %34 : vector<16x1xf32> to vector<16x256xf32>
    %36 = arith.addf %33, %35 : vector<16x256xf32>
    %37 = vector.extract_strided_slice %20 {offsets = [0, 1], sizes = [16, 1], strides = [1, 1]} : vector<16x9xf32> to vector<16x1xf32>
    %38 = vector.broadcast %37 : vector<16x1xf32> to vector<16x256xf32>
    %39 = arith.mulf %25, %38 : vector<16x256xf32>
    %40 = arith.addf %36, %39 : vector<16x256xf32>
    %41 = vector.extract_strided_slice %20 {offsets = [0, 7], sizes = [16, 1], strides = [1, 1]} : vector<16x9xf32> to vector<16x1xf32>
    %42 = vector.broadcast %41 : vector<16x1xf32> to vector<16x256xf32>
    %43 = arith.mulf %30, %42 : vector<16x256xf32>
    %44 = arith.addf %40, %43 : vector<16x256xf32>
    %c1_i32 = arith.constant 1 : i32
    %45 = tpu.dynamic_rotate %25 by %c1_i32 dim 1 : vector<16x256xf32>, i32 -> vector<16x256xf32>
    %cst_15 = arith.constant 0.000000e+00 : f32
    %46 = vector.shape_cast %18 : vector<1x256xi1> to vector<1x256xi1>
    %47 = vector.broadcast %46 : vector<1x256xi1> to vector<16x256xi1>
    %48 = vector.broadcast %cst_15 : f32 to vector<16x256xf32>
    %49 = arith.select %47, %45, %48 : vector<16x256xi1>, vector<16x256xf32>
    %c255_i32 = arith.constant 255 : i32
    %50 = tpu.dynamic_rotate %25 by %c255_i32 dim 1 : vector<16x256xf32>, i32 -> vector<16x256xf32>
    %cst_16 = arith.constant 0.000000e+00 : f32
    %51 = vector.shape_cast %19 : vector<1x256xi1> to vector<1x256xi1>
    %52 = vector.broadcast %51 : vector<1x256xi1> to vector<16x256xi1>
    %53 = vector.broadcast %cst_16 : f32 to vector<16x256xf32>
    %54 = arith.select %52, %50, %53 : vector<16x256xi1>, vector<16x256xf32>
    %55 = vector.extract_strided_slice %20 {offsets = [0, 0], sizes = [16, 1], strides = [1, 1]} : vector<16x9xf32> to vector<16x1xf32>
    %56 = vector.broadcast %55 : vector<16x1xf32> to vector<16x256xf32>
    %57 = arith.mulf %49, %56 : vector<16x256xf32>
    %58 = arith.addf %44, %57 : vector<16x256xf32>
    %59 = vector.extract_strided_slice %20 {offsets = [0, 2], sizes = [16, 1], strides = [1, 1]} : vector<16x9xf32> to vector<16x1xf32>
    %60 = vector.broadcast %59 : vector<16x1xf32> to vector<16x256xf32>
    %61 = arith.mulf %54, %60 : vector<16x256xf32>
    %62 = arith.addf %58, %61 : vector<16x256xf32>
    %c1_i32_17 = arith.constant 1 : i32
    %63 = tpu.dynamic_rotate %12 by %c1_i32_17 dim 1 : vector<16x256xf32>, i32 -> vector<16x256xf32>
    %cst_18 = arith.constant 0.000000e+00 : f32
    %64 = vector.shape_cast %18 : vector<1x256xi1> to vector<1x256xi1>
    %65 = vector.broadcast %64 : vector<1x256xi1> to vector<16x256xi1>
    %66 = vector.broadcast %cst_18 : f32 to vector<16x256xf32>
    %67 = arith.select %65, %63, %66 : vector<16x256xi1>, vector<16x256xf32>
    %c255_i32_19 = arith.constant 255 : i32
    %68 = tpu.dynamic_rotate %12 by %c255_i32_19 dim 1 : vector<16x256xf32>, i32 -> vector<16x256xf32>
    %cst_20 = arith.constant 0.000000e+00 : f32
    %69 = vector.shape_cast %19 : vector<1x256xi1> to vector<1x256xi1>
    %70 = vector.broadcast %69 : vector<1x256xi1> to vector<16x256xi1>
    %71 = vector.broadcast %cst_20 : f32 to vector<16x256xf32>
    %72 = arith.select %70, %68, %71 : vector<16x256xi1>, vector<16x256xf32>
    %73 = vector.extract_strided_slice %20 {offsets = [0, 3], sizes = [16, 1], strides = [1, 1]} : vector<16x9xf32> to vector<16x1xf32>
    %74 = vector.broadcast %73 : vector<16x1xf32> to vector<16x256xf32>
    %75 = arith.mulf %67, %74 : vector<16x256xf32>
    %76 = arith.addf %62, %75 : vector<16x256xf32>
    %77 = vector.extract_strided_slice %20 {offsets = [0, 5], sizes = [16, 1], strides = [1, 1]} : vector<16x9xf32> to vector<16x1xf32>
    %78 = vector.broadcast %77 : vector<16x1xf32> to vector<16x256xf32>
    %79 = arith.mulf %72, %78 : vector<16x256xf32>
    %80 = arith.addf %76, %79 : vector<16x256xf32>
    %c1_i32_21 = arith.constant 1 : i32
    %81 = tpu.dynamic_rotate %30 by %c1_i32_21 dim 1 : vector<16x256xf32>, i32 -> vector<16x256xf32>
    %cst_22 = arith.constant 0.000000e+00 : f32
    %82 = vector.shape_cast %18 : vector<1x256xi1> to vector<1x256xi1>
    %83 = vector.broadcast %82 : vector<1x256xi1> to vector<16x256xi1>
    %84 = vector.broadcast %cst_22 : f32 to vector<16x256xf32>
    %85 = arith.select %83, %81, %84 : vector<16x256xi1>, vector<16x256xf32>
    %c255_i32_23 = arith.constant 255 : i32
    %86 = tpu.dynamic_rotate %30 by %c255_i32_23 dim 1 : vector<16x256xf32>, i32 -> vector<16x256xf32>
    %cst_24 = arith.constant 0.000000e+00 : f32
    %87 = vector.shape_cast %19 : vector<1x256xi1> to vector<1x256xi1>
    %88 = vector.broadcast %87 : vector<1x256xi1> to vector<16x256xi1>
    %89 = vector.broadcast %cst_24 : f32 to vector<16x256xf32>
    %90 = arith.select %88, %86, %89 : vector<16x256xi1>, vector<16x256xf32>
    %91 = vector.extract_strided_slice %20 {offsets = [0, 6], sizes = [16, 1], strides = [1, 1]} : vector<16x9xf32> to vector<16x1xf32>
    %92 = vector.broadcast %91 : vector<16x1xf32> to vector<16x256xf32>
    %93 = arith.mulf %85, %92 : vector<16x256xf32>
    %94 = arith.addf %80, %93 : vector<16x256xf32>
    %95 = vector.extract_strided_slice %20 {offsets = [0, 8], sizes = [16, 1], strides = [1, 1]} : vector<16x9xf32> to vector<16x1xf32>
    %96 = vector.broadcast %95 : vector<16x1xf32> to vector<16x256xf32>
    %97 = arith.mulf %90, %96 : vector<16x256xf32>
    %98 = arith.addf %94, %97 : vector<16x256xf32>
    %99 = arith.negf %98 : vector<16x256xf32>
    %100 = math.exp %99 : vector<16x256xf32>
    %cst_25 = arith.constant 1.000000e+00 : f32
    %101 = vector.broadcast %cst_25 : f32 to vector<16x256xf32>
    %102 = arith.addf %101, %100 : vector<16x256xf32>
    %103 = arith.divf %101, %102 : vector<16x256xf32>
    %104 = arith.mulf %98, %103 : vector<16x256xf32>
    %c0_26 = arith.constant 0 : index
    %c0_27 = arith.constant 0 : index
    %105 = vector.load %arg7[%c0_26, %c0_27] : memref<4x16xf32, #tpu.memory_space<vmem>>, vector<4x16xf32>
    %cst_28 = arith.constant dense<0.000000e+00> : vector<4x256xf32>
    %106 = tpu.matmul %105, %104, %cst_28 {dimension_numbers = #tpu.dot_dimension_numbers<[1], [0], [0], [1], [0, 0, 1, 1], [], []>} : vector<4x16xf32>, vector<16x256xf32>, vector<4x256xf32> -> vector<4x256xf32>
    %c0_29 = arith.constant 0 : index
    %c0_30 = arith.constant 0 : index
    %107 = vector.load %arg8[%c0_29, %c0_30] : memref<4x1xf32, #tpu.memory_space<vmem>>, vector<4x1xf32>
    %108 = vector.broadcast %107 : vector<4x1xf32> to vector<4x256xf32>
    %109 = arith.addf %106, %108 : vector<4x256xf32>
    %c0_31 = arith.constant 0 : index
    %c0_32 = arith.constant 0 : index
    %c0_33 = arith.constant 0 : index
    %110 = vector.load %arg2[%c0_31, %c0_32, %c0_33] : memref<1x4x256xf32, #tpu.memory_space<vmem>>, vector<1x4x256xf32>
    %111 = vector.shape_cast %110 : vector<1x4x256xf32> to vector<4x256xf32>
    %112 = arith.addf %109, %111 : vector<4x256xf32>
    %c0_34 = arith.constant 0 : index
    %c0_35 = arith.constant 0 : index
    %c0_36 = arith.constant 0 : index
    %113 = vector.load %arg9[%c0_34, %c0_35, %c0_36] : memref<1x4x256xf32, #tpu.memory_space<vmem>>, vector<1x4x256xf32>
    %114 = vector.shape_cast %113 : vector<1x4x256xf32> to vector<4x256xf32>
    %115 = vector.shape_cast %112 : vector<4x256xf32> to vector<1x4x256xf32>
    tpu.vector_store %arg9[%c0_34, %c0_35, %c0_36], %115 {strides = array<i32>} : memref<1x4x256xf32, #tpu.memory_space<vmem>>, vector<1x4x256xf32>,
    return
  }
  func.func @transform_0(%arg0: i32) -> (i32, i32) {
    %c0_i32 = arith.constant 0 : i32
    %c0_i32_0 = arith.constant 0 : i32
    %c0_i32_1 = arith.constant 0 : i32
    return %c0_i32, %c0_i32_0 : i32, i32
  }
  func.func @transform_1(%arg0: i32) -> (i32, i32, i32) {
    %c0_i32 = arith.constant 0 : i32
    %c0_i32_0 = arith.constant 0 : i32
    %c0_i32_1 = arith.constant 0 : i32
    return %arg0, %c0_i32, %c0_i32_0 : i32, i32, i32
  }
  func.func @transform_2(%arg0: i32) -> (i32, i32) {
    %c0_i32 = arith.constant 0 : i32
    %c0_i32_0 = arith.constant 0 : i32
    %c0_i32_1 = arith.constant 0 : i32
    return %c0_i32, %c0_i32_0 : i32, i32
  }
  func.func @transform_3(%arg0: i32) -> (i32, i32) {
    %c0_i32 = arith.constant 0 : i32
    %c0_i32_0 = arith.constant 0 : i32
    %c0_i32_1 = arith.constant 0 : i32
    return %c0_i32, %c0_i32_0 : i32, i32
  }
  func.func @transform_4(%arg0: i32) -> (i32, i32) {
    %c0_i32 = arith.constant 0 : i32
    %c0_i32_0 = arith.constant 0 : i32
    %c0_i32_1 = arith.constant 0 : i32
    return %c0_i32, %c0_i32_0 : i32, i32
  }
  func.func @transform_5(%arg0: i32) -> (i32, i32) {
    %c0_i32 = arith.constant 0 : i32
    %c0_i32_0 = arith.constant 0 : i32
    %c0_i32_1 = arith.constant 0 : i32
    return %c0_i32, %c0_i32_0 : i32, i32
  }
  func.func @transform_6(%arg0: i32) -> (i32, i32) {
    %c0_i32 = arith.constant 0 : i32
    %c0_i32_0 = arith.constant 0 : i32
    %c0_i32_1 = arith.constant 0 : i32
    return %c0_i32, %c0_i32_0 : i32, i32
  }
  func.func @transform_7(%arg0: i32) -> (i32, i32) {
    %c0_i32 = arith.constant 0 : i32
    %c0_i32_0 = arith.constant 0 : i32
    %c0_i32_1 = arith.constant 0 : i32
    return %c0_i32, %c0_i32_0 : i32, i32
  }
  func.func @transform_8(%arg0: i32) -> (i32, i32, i32) {
    %c0_i32 = arith.constant 0 : i32
    %c0_i32_0 = arith.constant 0 : i32
    %c0_i32_1 = arith.constant 0 : i32
    return %arg0, %c0_i32, %c0_i32_0 : i32, i32, i32
  }
}

</mosaic_0001>

<llo_original>
// kernel: tpu_custom_call.1
$region0: #{tpu_custom_call.1}
  #allocation0 [shape = 'u32[]', space=smem, size = 0x4, offset = 0x4, fixed_abs, tag = 'smem constant byte address 0x4 - core index']
  #allocation1 [shape = 'u32[144,128]{1,0:T(1,128)}', space=vmem, size = 0x12000, scoped, tag = 'internal scratch']
  %s0 = inlined_call_operand.vmem [shape: s32[4,256], index: 0, kind: input, shape index: {}]
  %s1 = inlined_call_operand.vmem [shape: f32[2,4,256], index: 1, kind: input, shape index: {}]
  %s2 = inlined_call_operand.vmem [shape: f32[16,4], index: 2, kind: input, shape index: {}]
  %s3 = inlined_call_operand.vmem [shape: f32[16,1], index: 3, kind: input, shape index: {}]
  %s4 = inlined_call_operand.vmem [shape: f32[16,9], index: 4, kind: input, shape index: {}]
  %s5 = inlined_call_operand.vmem [shape: f32[16,1], index: 5, kind: input, shape index: {}]
  %s6 = inlined_call_operand.vmem [shape: f32[4,16], index: 6, kind: input, shape index: {}]
  %s7 = inlined_call_operand.vmem [shape: f32[4,1], index: 7, kind: input, shape index: {}]
  %s8 = inlined_call_operand.hbm [shape: f32[2,4,256], index: 8, kind: output, shape index: {}]
  %s9 = sld [smem:[#allocation0]]
  $region65: #{tpu_custom_call.1} parent=0
    _
  %s11 = ssub.s32 1, %s9
  %s12 = scalar_select 0, %s11, %s9
  $region1: #{tpu_custom_call.1} parent=0
    #allocation2 [shape = 'u8[8192]{0}', space=vmem, size = 0x2000, scoped, tag = 'output window, operand 0']
    #allocation3 [shape = 's32[2]{0}', space=sflag, size = 0x8, scoped, tag = 'scoped memory for tpu_custom_call.1']
    %13 = vsyncpa [#allocation3], 0
    %s14 = scalar_lea.sflag [#allocation3], 1
    %15 = vsyncpa %s14, 0
    loop: start=0, step=1, limit=4
    $region2: #{tpu_custom_call.1} parent=1 // loop_pre_header
      _
    $region3: #{tpu_custom_call.1} parent=1 // loop_header
      %s17 = sphi 0, %s21
      %p18 = scmp.ge.s32.totalorder %s17, 4
      %s25 = sphi 0, %s25
      %s27 = sphi 0, %s25
      %s28 = sphi 0, %s27
      %s42 = sphi 0, %s28
      %s48 = sphi 0, %s50
      %s51 = sphi 0, %s48
      %s52 = sphi 0, %s51
      %s68 = sphi 0, %s52
      %s72 = sphi 0, %s72
      %s74 = sphi 0, %s72
      %s75 = sphi 0, %s74
      %s89 = sphi 0, %s75
      %s93 = sphi 0, %s93
      %s95 = sphi 0, %s93
      %s96 = sphi 0, %s95
      %s110 = sphi 0, %s96
      %s114 = sphi 0, %s114
      %s116 = sphi 0, %s114
      %s117 = sphi 0, %s116
      %s131 = sphi 0, %s117
      %s135 = sphi 0, %s135
      %s137 = sphi 0, %s135
      %s138 = sphi 0, %s137
      %s152 = sphi 0, %s138
      %s156 = sphi 0, %s156
      %s158 = sphi 0, %s156
      %s159 = sphi 0, %s158
      %s173 = sphi 0, %s159
      %s177 = sphi 0, %s177
      %s179 = sphi 0, %s177
      %s180 = sphi 0, %s179
      %s194 = sphi 0, %s180
      %s200 = sphi 0, %s202
      %s203 = sphi 0, %s200
      %s204 = sphi 0, %s203
      %s220 = sphi 0, %s204
    $region4: #{tpu_custom_call.1} parent=1 // loop_header_branch
      %20 = sbr.rel (%p18) target = $region8
    $region5: #{tpu_custom_call.1} parent=1 // loop_body
      %s22 = ssub.s32 %s17, 1
      %s23 = ssub.s32 %s17, 2
      %s24 = sadd.s32 %s17, 1
      %s26 = sadd.s32 %s25, 1
      %p29 = scmp.eq.s32.totalorder %s17, 1
      %p30 = scmp.ne.s32.totalorder %s25, %s27
      %p31 = scmp.eq.s32.totalorder %s17, 0
      %p32 = por %p30, %p31
      %p33 = scmp.ne.s32.totalorder %s25, %s27
      %p34 = scmp.eq.s32.totalorder %s22, 1
      %p35 = por %p33, %p34
      %p36 = scmp.ne.s32.totalorder %s27, %s28
      %p37 = scmp.eq.s32.totalorder %s22, 0
      %p38 = por %p36, %p37
      %p39 = scmp.ne.s32.totalorder %s27, %s28
      %p40 = scmp.eq.s32.totalorder %s23, 1
      %p41 = por %p39, %p40
      %p43 = scmp.ne.s32.totalorder %s28, %s42
      %p44 = scmp.eq.s32.totalorder %s23, 0
      %p45 = por %p43, %p44
      %s46 = ssub.s32 %s17, %s24
      %p47 = scmp.eq.s32.totalorder %s46, 0
      %s49 = sadd.s32 %s48, 1
      %s50 = scalar_select %p47, %s48, %s49
      %p53 = pneg %p47
      %p54 = scmp.eq.s32.totalorder %s17, 1
      %p55 = por %p53, %p54
      %p56 = scmp.ne.s32.totalorder %s48, %s51
      %p57 = scmp.eq.s32.totalorder %s17, 0
      %p58 = por %p56, %p57
      %p59 = scmp.ne.s32.totalorder %s48, %s51
      %p60 = scmp.eq.s32.totalorder %s22, 1
      %p61 = por %p59, %p60
      %p62 = scmp.ne.s32.totalorder %s51, %s52
      %p63 = scmp.eq.s32.totalorder %s22, 0
      %p64 = por %p62, %p63
      %p65 = scmp.ne.s32.totalorder %s51, %s52
      %p66 = scmp.eq.s32.totalorder %s23, 1
      %p67 = por %p65, %p66
      %p69 = scmp.ne.s32.totalorder %s52, %s68
      %p70 = scmp.eq.s32.totalorder %s23, 0
      %p71 = por %p69, %p70
      %s73 = sadd.s32 %s72, 1
      %p76 = scmp.eq.s32.totalorder %s17, 1
      %p77 = scmp.ne.s32.totalorder %s72, %s74
      %p78 = scmp.eq.s32.totalorder %s17, 0
      %p79 = por %p77, %p78
      %p80 = scmp.ne.s32.totalorder %s72, %s74
      %p81 = scmp.eq.s32.totalorder %s22, 1
      %p82 = por %p80, %p81
      %p83 = scmp.ne.s32.totalorder %s74, %s75
      %p84 = scmp.eq.s32.totalorder %s22, 0
      %p85 = por %p83, %p84
      %p86 = scmp.ne.s32.totalorder %s74, %s75
      %p87 = scmp.eq.s32.totalorder %s23, 1
      %p88 = por %p86, %p87
      %p90 = scmp.ne.s32.totalorder %s75, %s89
      %p91 = scmp.eq.s32.totalorder %s23, 0
      %p92 = por %p90, %p91
      %s94 = sadd.s32 %s93, 1
      %p97 = scmp.eq.s32.totalorder %s17, 1
      %p98 = scmp.ne.s32.totalorder %s93, %s95
      %p99 = scmp.eq.s32.totalorder %s17, 0
      %p100 = por %p98, %p99
      %p101 = scmp.ne.s32.totalorder %s93, %s95
      %p102 = scmp.eq.s32.totalorder %s22, 1
      %p103 = por %p101, %p102
      %p104 = scmp.ne.s32.totalorder %s95, %s96
      %p105 = scmp.eq.s32.totalorder %s22, 0
      %p106 = por %p104, %p105
      %p107 = scmp.ne.s32.totalorder %s95, %s96
      %p108 = scmp.eq.s32.totalorder %s23, 1
      %p109 = por %p107, %p108
      %p111 = scmp.ne.s32.totalorder %s96, %s110
      %p112 = scmp.eq.s32.totalorder %s23, 0
      %p113 = por %p111, %p112
      %s115 = sadd.s32 %s114, 1
      %p118 = scmp.eq.s32.totalorder %s17, 1
      %p119 = scmp.ne.s32.totalorder %s114, %s116
      %p120 = scmp.eq.s32.totalorder %s17, 0
      %p121 = por %p119, %p120
      %p122 = scmp.ne.s32.totalorder %s114, %s116
      %p123 = scmp.eq.s32.totalorder %s22, 1
      %p124 = por %p122, %p123
      %p125 = scmp.ne.s32.totalorder %s116, %s117
      %p126 = scmp.eq.s32.totalorder %s22, 0
      %p127 = por %p125, %p126
      %p128 = scmp.ne.s32.totalorder %s116, %s117
      %p129 = scmp.eq.s32.totalorder %s23, 1
      %p130 = por %p128, %p129
      %p132 = scmp.ne.s32.totalorder %s117, %s131
      %p133 = scmp.eq.s32.totalorder %s23, 0
      %p134 = por %p132, %p133
      %s136 = sadd.s32 %s135, 1
      %p139 = scmp.eq.s32.totalorder %s17, 1
      %p140 = scmp.ne.s32.totalorder %s135, %s137
      %p141 = scmp.eq.s32.totalorder %s17, 0
      %p142 = por %p140, %p141
      %p143 = scmp.ne.s32.totalorder %s135, %s137
      %p144 = scmp.eq.s32.totalorder %s22, 1
      %p145 = por %p143, %p144
      %p146 = scmp.ne.s32.totalorder %s137, %s138
      %p147 = scmp.eq.s32.totalorder %s22, 0
      %p148 = por %p146, %p147
      %p149 = scmp.ne.s32.totalorder %s137, %s138
      %p150 = scmp.eq.s32.totalorder %s23, 1
      %p151 = por %p149, %p150
      %p153 = scmp.ne.s32.totalorder %s138, %s152
      %p154 = scmp.eq.s32.totalorder %s23, 0
      %p155 = por %p153, %p154
      %s157 = sadd.s32 %s156, 1
      %p160 = scmp.eq.s32.totalorder %s17, 1
      %p161 = scmp.ne.s32.totalorder %s156, %s158
      %p162 = scmp.eq.s32.totalorder %s17, 0
      %p163 = por %p161, %p162
      %p164 = scmp.ne.s32.totalorder %s156, %s158
      %p165 = scmp.eq.s32.totalorder %s22, 1
      %p166 = por %p164, %p165
      %p167 = scmp.ne.s32.totalorder %s158, %s159
      %p168 = scmp.eq.s32.totalorder %s22, 0
      %p169 = por %p167, %p168
      %p170 = scmp.ne.s32.totalorder %s158, %s159
      %p171 = scmp.eq.s32.totalorder %s23, 1
      %p172 = por %p170, %p171
      %p174 = scmp.ne.s32.totalorder %s159, %s173
      %p175 = scmp.eq.s32.totalorder %s23, 0
      %p176 = por %p174, %p175
      %s178 = sadd.s32 %s177, 1
      %p181 = scmp.eq.s32.totalorder %s17, 1
      %p182 = scmp.ne.s32.totalorder %s177, %s179
      %p183 = scmp.eq.s32.totalorder %s17, 0
      %p184 = por %p182, %p183
      %p185 = scmp.ne.s32.totalorder %s177, %s179
      %p186 = scmp.eq.s32.totalorder %s22, 1
      %p187 = por %p185, %p186
      %p188 = scmp.ne.s32.totalorder %s179, %s180
      %p189 = scmp.eq.s32.totalorder %s22, 0
      %p190 = por %p188, %p189
      %p191 = scmp.ne.s32.totalorder %s179, %s180
      %p192 = scmp.eq.s32.totalorder %s23, 1
      %p193 = por %p191, %p192
      %p195 = scmp.ne.s32.totalorder %s180, %s194
      %p196 = scmp.eq.s32.totalorder %s23, 0
      %p197 = por %p195, %p196
      %s198 = ssub.s32 %s17, %s24
      %p199 = scmp.eq.s32.totalorder %s198, 0
      %s201 = sadd.s32 %s200, 1
      %s202 = scalar_select %p199, %s200, %s201
      %p205 = pneg %p199
      %p206 = scmp.eq.s32.totalorder %s17, 1
      %p207 = por %p205, %p206
      %p208 = scmp.ne.s32.totalorder %s200, %s203
      %p209 = scmp.eq.s32.totalorder %s17, 0
      %p210 = por %p208, %p209
      %p211 = scmp.ne.s32.totalorder %s200, %s203
      %p212 = scmp.eq.s32.totalorder %s22, 1
      %p213 = por %p211, %p212
      %p214 = scmp.ne.s32.totalorder %s203, %s204
      %p215 = scmp.eq.s32.totalorder %s22, 0
      %p216 = por %p214, %p215
      %p217 = scmp.ne.s32.totalorder %s203, %s204
      %p218 = scmp.eq.s32.totalorder %s23, 1
      %p219 = por %p217, %p218
      %p221 = scmp.ne.s32.totalorder %s204, %s220
      %p222 = scmp.eq.s32.totalorder %s23, 0
      %p223 = por %p221, %p222
      %p224 = scmp.le.s32.totalorder 1, %s17
      %p225 = scmp.lt.s32.totalorder %s17, 3
      %p226 = pnand %p224, %p225
      %p227 = pneg %p226
      // Predicated region
      $region9: #{tpu_custom_call.1} parent=5 // pred_check
        _
      $region10: #{tpu_custom_call.1} parent=5 // pred_check_branch
        %229 = sbr.rel (%p226) target = $region12
      $region11: #{tpu_custom_call.1} parent=5 // pred_region
        %s230 = ssub.s32 %s17, 1
        // Predicated region
        $region13: #{tpu_custom_call.1} parent=11 // pred_check
          %p231 = pneg %p38
        $region14: #{tpu_custom_call.1} parent=11 // pred_check_branch
          %233 = sbr.rel (%p231) target = $region16
        $region15: #{tpu_custom_call.1} parent=11 // pred_region
          _
        $region16: #{tpu_custom_call.1} parent=11 // pred_fallthru
          _
        // Predicated region
        $region17: #{tpu_custom_call.1} parent=11 // pred_check
          %p234 = pneg %p85
        $region18: #{tpu_custom_call.1} parent=11 // pred_check_branch
          %236 = sbr.rel (%p234) target = $region20
        $region19: #{tpu_custom_call.1} parent=11 // pred_region
          _
        $region20: #{tpu_custom_call.1} parent=11 // pred_fallthru
          _
        // Predicated region
        $region21: #{tpu_custom_call.1} parent=11 // pred_check
          %p237 = pneg %p106
        $region22: #{tpu_custom_call.1} parent=11 // pred_check_branch
          %239 = sbr.rel (%p237) target = $region24
        $region23: #{tpu_custom_call.1} parent=11 // pred_region
          _
        $region24: #{tpu_custom_call.1} parent=11 // pred_fallthru
          _
        // Predicated region
        $region25: #{tpu_custom_call.1} parent=11 // pred_check
          %p240 = pneg %p127
        $region26: #{tpu_custom_call.1} parent=11 // pred_check_branch
          %242 = sbr.rel (%p240) target = $region28
        $region27: #{tpu_custom_call.1} parent=11 // pred_region
          _
        $region28: #{tpu_custom_call.1} parent=11 // pred_fallthru
          _
        // Predicated region
        $region29: #{tpu_custom_call.1} parent=11 // pred_check
          %p243 = pneg %p148
        $region30: #{tpu_custom_call.1} parent=11 // pred_check_branch
          %245 = sbr.rel (%p243) target = $region32
        $region31: #{tpu_custom_call.1} parent=11 // pred_region
          _
        $region32: #{tpu_custom_call.1} parent=11 // pred_fallthru
          _
        // Predicated region
        $region33: #{tpu_custom_call.1} parent=11 // pred_check
          %p246 = pneg %p169
        $region34: #{tpu_custom_call.1} parent=11 // pred_check_branch
          %248 = sbr.rel (%p246) target = $region36
        $region35: #{tpu_custom_call.1} parent=11 // pred_region
          _
        $region36: #{tpu_custom_call.1} parent=11 // pred_fallthru
          _
        // Predicated region
        $region37: #{tpu_custom_call.1} parent=11 // pred_check
          %p249 = pneg %p190
        $region38: #{tpu_custom_call.1} parent=11 // pred_check_branch
          %251 = sbr.rel (%p249) target = $region40
        $region39: #{tpu_custom_call.1} parent=11 // pred_region
          _
        $region40: #{tpu_custom_call.1} parent=11 // pred_fallthru
          _
      $region12: #{tpu_custom_call.1} parent=5 // pred_fallthru
        _
      %p252 = scmp.lt.s32.totalorder %s17, 2
      // Predicated region
      $region41: #{tpu_custom_call.1} parent=5 // pred_check
        %p253 = pneg %p252
      $region42: #{tpu_custom_call.1} parent=5 // pred_check_branch
        %255 = sbr.rel (%p253) target = $region44
      $region43: #{tpu_custom_call.1} parent=5 // pred_region
        // Predicated region
        $region45: #{tpu_custom_call.1} parent=43 // pred_check
          %p256 = pneg %p58
        $region46: #{tpu_custom_call.1} parent=43 // pred_check_branch
          %258 = sbr.rel (%p256) target = $region48
        $region47: #{tpu_custom_call.1} parent=43 // pred_region
          %p259 = scmp.lt.s32.totalorder %s17, 1
          %s260 = scalar_select %p259, %s17, 1
          %s261 = smul.addr %s260, 2
          %s262 = smul.addr %s261, 4
          %s263 = scalar_lea.vmem %s1, %s262
        $region48: #{tpu_custom_call.1} parent=43 // pred_fallthru
          _
      $region44: #{tpu_custom_call.1} parent=5 // pred_fallthru
        _
      %p264 = scmp.le.s32.totalorder 1, %s17
      %p265 = scmp.lt.s32.totalorder %s17, 3
      %p266 = pnand %p264, %p265
      %p267 = pneg %p266
      // Predicated region
      $region49: #{tpu_custom_call.1} parent=5 // pred_check
        _
      $region50: #{tpu_custom_call.1} parent=5 // pred_check_branch
        %269 = sbr.rel (%p266) target = $region52
      $region51: #{tpu_custom_call.1} parent=5 // pred_region
        %s270 = ssub.s32 %s17, 1
        %p271 = pneg %p38
        %p272 = pneg %p35
        %p273 = scmp.lt.s32.totalorder %s22, 1
        %s274 = scalar_select %p273, %s22, 1
        %s275 = smul.addr %s274, 2
        %s276 = smul.addr %s275, 4
        %s277 = scalar_lea.vmem %s1, %s276
        %p278 = pneg %p64
        %p279 = pneg %p61
        %p280 = pneg %p85
        %p281 = pneg %p82
        %p282 = pneg %p106
        %p283 = pneg %p103
        %p284 = pneg %p127
        %p285 = pneg %p124
        %p286 = pneg %p148
        %p287 = pneg %p145
        %p288 = pneg %p169
        %p289 = pneg %p166
        %p290 = pneg %p190
        %p291 = pneg %p187
        %p292 = pneg %p216
        %p293 = pneg %p213
        %s294 = sand.u32 %s203, 1
        %s295 = scalar_lea.sflag [#allocation3], %s294
        %s296 = sand.u32 %s203, 1
        %s297 = smul.addr %s296, 8
        %s298 = scalar_lea.vmem [#allocation2], %s297
        %p299 = scmp.lt.s32.totalorder %s22, 1
        %s300 = scalar_select %p299, %s22, 1
        %s301 = smul.addr %s300, 2
        %s302 = smul.addr %s301, 4
        %s303 = scalar_lea.vmem %s1, %s302
        %v304 = vld [vmem:[%s303] sm:$0xff]
        %v305 = vld [vmem:[%s2] sm:$0xff]
        %v306 = vld [vmem:[%s2 + $0x8] sm:$0xff]
        %v307 = vld [vmem:[%s3] sm:$0xff]
        %v308 = vld [vmem:[%s3 + $0x8] sm:$0xff]
        %310 = vset.pattern.permute.xlu0 0
        %311 = vperm.xlu0 %310, %v307
        %v312 = vpop.permute.xlu0 %311
        %315 = vset.pattern.permute.xlu0 0
        %316 = vperm.xlu0 %315, %v308
        %v317 = vpop.permute.xlu0 %316
        %v320 = vcombine.high %v304, %v304
        %vm321 = vcmask 31744
        %v323 = vsel %vm321, %v305, 0
        %v326 = vsel %vm321, %v306, 0
        %vm328 = vcmask 1043456
        %v329 = vsel %vm328, %v304, 0
        %v331 = vsel %vm328, %v320, 0
        %333 = vmatprep.subr.mxu0 0.0
        %334 = vmatpush1.msra.mxu0 0.0
        %335 = vmatprep.subr.mxu0 0.0
        %336 = vmatpush1.msra.mxu0 0.0
        %337 = vmatprep.subr.mxu0 0.0
        %338 = vmatpush1.msra.mxu0 0.0
        %339 = vmatprep.subr.mxu0 0.0
        %340 = vmatpush1.msra.mxu0 0.0
        %341 = vmatprep.subr.mxu0 0.0
        %342 = vmatpush1.msra.mxu0 0.0
        %343 = vmatprep.subr.mxu0 0.0
        %344 = vmatpush1.msra.mxu0 0.0
        %345 = vmatprep.subr.mxu0 0.0
        %346 = vmatpush1.msra.mxu0 0.0
        %347 = vmatprep.subr.mxu0 0.0
        %348 = vmatpush1.msra.mxu0 0.0
        %349 = vmatprep.subr.mxu0 0.0
        %350 = vmatpush1.msra.mxu0 0.0
        %351 = vmatprep.subr.mxu0 0.0
        %352 = vmatpush1.msra.mxu0 0.0
        %353 = vmatprep.subr.mxu0 0.0
        %354 = vmatpush1.msra.mxu0 0.0
        %355 = vmatprep.subr.mxu0 0.0
        %356 = vmatpush1.msra.mxu0 0.0
        %357 = vmatprep.subr.mxu0 0.0
        %358 = vmatpush1.msra.mxu0 0.0
        %359 = vmatprep.subr.mxu0 0.0
        %360 = vmatpush1.msra.mxu0 0.0
        %361 = vmatprep.subr.mxu0 0.0
        %362 = vmatpush1.msra.mxu0 0.0
        %363 = vmatprep.subr.mxu0 %v331
        %364 = vmatpush1.msra.mxu0 %v329
        %365 = vmatprep.subr.mxu0 0.0
        %366 = vmatpush2.msra.mxu0 0.0
        %367 = vmatprep.subr.mxu0 0.0
        %368 = vmatpush2.msra.mxu0 0.0
        %369 = vmatprep.subr.mxu0 0.0
        %370 = vmatpush2.msra.mxu0 0.0
        %371 = vmatprep.subr.mxu0 0.0
        %372 = vmatpush2.msra.mxu0 0.0
        %373 = vmatprep.subr.mxu0 0.0
        %374 = vmatpush2.msra.mxu0 0.0
        %375 = vmatprep.subr.mxu0 0.0
        %376 = vmatpush2.msra.mxu0 0.0
        %377 = vmatprep.subr.mxu0 0.0
        %378 = vmatpush2.msra.mxu0 0.0
        %379 = vmatprep.subr.mxu0 0.0
        %380 = vmatpush2.msra.mxu0 0.0
        %381 = vmatprep.subr.mxu0 0.0
        %382 = vmatpush2.msra.mxu0 0.0
        %383 = vmatprep.subr.mxu0 0.0
        %384 = vmatpush2.msra.mxu0 0.0
        %385 = vmatprep.subr.mxu0 0.0
        %386 = vmatpush2.msra.mxu0 0.0
        %387 = vmatprep.subr.mxu0 0.0
        %388 = vmatpush2.msra.mxu0 0.0
        %389 = vmatprep.subr.mxu0 0.0
        %390 = vmatpush2.msra.mxu0 0.0
        %391 = vmatprep.subr.mxu0 0.0
        %392 = vmatpush2.msra.mxu0 0.0
        %393 = vmatprep.subr.mxu0 0.0
        %394 = vmatpush2.msra.mxu0 0.0
        %395 = vmatprep.subr.mxu0 0.0
        %396 = vmatpush2.msra.mxu0 0.0
        %397 = vmatprep.mubr.f32.mxu0 0.0
        %398 = vmatmul.mubr.f32.gmra.mxu0 %v323
        %v399 = vpop.f32.mrf.mxu0
        %v400 = vadd.f32 %v312, %v399
        %v401 = vpop.f32.mrf.mxu0
        %v402 = vadd.f32 %v312, %v401
        %403 = vmatprep.mubr.f32.mxu0 0.0
        %404 = vmatmul.mubr.f32.gmra.mxu0 %v326
        %v405 = vpop.f32.mrf.mxu0
        %v406 = vadd.f32 %v317, %v405
        %v407 = vpop.f32.mrf.mxu0
        %v408 = vadd.f32 %v317, %v407
        %409 = vdwg.mxu0
        %v410 = vxor.u32 %v400, 2147483648
        %v411 = vxor.u32 %v402, 2147483648
        %v412 = vxor.u32 %v406, 2147483648
        %v413 = vxor.u32 %v408, 2147483648
        %v414 = vmul.f32 %v410, 1.442695
        %v415 = vpow.pop %v414
        %v416 = vmul.f32 %v411, 1.442695
        %v417 = vpow.pop %v416
        %v418 = vmul.f32 %v412, 1.442695
        %v419 = vpow.pop %v418
        %v420 = vmul.f32 %v413, 1.442695
        %v421 = vpow.pop %v420
        %v422 = vadd.f32 %v415, 1.0
        %v423 = vadd.f32 %v417, 1.0
        %v424 = vadd.f32 %v419, 1.0
        %v425 = vadd.f32 %v421, 1.0
        %v426 = vrcp.pop %v422
        %v427 = vmul.f32 1.0, %v426
        %v428 = vrcp.pop %v423
        %v429 = vmul.f32 1.0, %v428
        %v430 = vrcp.pop %v424
        %v431 = vmul.f32 1.0, %v430
        %v432 = vrcp.pop %v425
        %v433 = vmul.f32 1.0, %v432
        %v434 = vmul.f32 %v400, %v427
        %v435 = vmul.f32 %v402, %v429
        %v436 = vmul.f32 %v406, %v431
        %v437 = vmul.f32 %v408, %v433
        %v438 = vld [vmem:[%s0] sm:$0xff]
        %vm439 = vcmp.ne.s32.totalorder %v438, 0
        %v440 = vld [vmem:[%s4] sm:$0xff]
        %v441 = vld [vmem:[%s4 + $0x8] sm:$0xff]
        %442 = vrot.lane.b32.xlu0 %v434, 16
        %v443 = vpop.permute.xlu0 %442
        %444 = vrot.lane.b32.xlu0 %v436, 16
        %v445 = vpop.permute.xlu0 %444
        %446 = vrot.lane.b32.xlu0 %v435, 16
        %v447 = vpop.permute.xlu0 %446
        %448 = vrot.lane.b32.xlu0 %v437, 16
        %v449 = vpop.permute.xlu0 %448
        %v450 = vlaneseq
        %v451 = vand.u32 %v450, 127
        %vm452 = vcmp.lt.s32.totalorder %v451, 16
        %v453 = vsel %vm452, %v443, %v447
        %v454 = vsel %vm452, %v445, %v449
        %v455 = vsel %vm452, %v447, %v443
        %v456 = vsel %vm452, %v449, %v445
        %v457 = vsel %vm439, 1, 0
        %vm458 = vcmp.eq.s32.totalorder %v457, 1
        %v463 = vcombine.low %v455, %v453
        %v464 = vcombine.high %v455, %v453
        %v465 = vcombine.low %v456, %v454
        %v466 = vcombine.high %v456, %v454
        %v467 = vrot.slane %v463, 1
        %v468 = vrot.slane %v463, 2
        %v469 = vrot.slane %v463, 3
        %v470 = vrot.slane %v464, 1
        %v471 = vrot.slane %v464, 2
        %v472 = vrot.slane %v464, 3
        %v473 = vrot.slane %v465, 1
        %v474 = vrot.slane %v465, 2
        %v475 = vrot.slane %v465, 3
        %v476 = vrot.slane %v466, 1
        %v477 = vrot.slane %v466, 2
        %v478 = vrot.slane %v466, 3
        %v495 = vsel %vm458, %v463, 0.0
        %v496 = vsel %vm458, %v467, 0.0
        %v497 = vsel %vm458, %v468, 0.0
        %v498 = vsel %vm458, %v469, 0.0
        %v499 = vsel %vm458, %v464, 0.0
        %v500 = vsel %vm458, %v470, 0.0
        %v501 = vsel %vm458, %v471, 0.0
        %v502 = vsel %vm458, %v472, 0.0
        %v503 = vsel %vm458, %v465, 0.0
        %v504 = vsel %vm458, %v473, 0.0
        %v505 = vsel %vm458, %v474, 0.0
        %v506 = vsel %vm458, %v475, 0.0
        %v507 = vsel %vm458, %v466, 0.0
        %v508 = vsel %vm458, %v476, 0.0
        %v509 = vsel %vm458, %v477, 0.0
        %v510 = vsel %vm458, %v478, 0.0
        %511 = vrot.lane.b32.xlu0 %v434, 112
        %v512 = vpop.permute.xlu0 %511
        %513 = vrot.lane.b32.xlu0 %v436, 112
        %v514 = vpop.permute.xlu0 %513
        %515 = vrot.lane.b32.xlu0 %v435, 112
        %v516 = vpop.permute.xlu0 %515
        %517 = vrot.lane.b32.xlu0 %v437, 112
        %v518 = vpop.permute.xlu0 %517
        %vm519 = vcmp.lt.s32.totalorder %v451, 112
        %v520 = vsel %vm519, %v512, %v516
        %v521 = vsel %vm519, %v514, %v518
        %v522 = vsel %vm519, %v516, %v512
        %v523 = vsel %vm519, %v518, %v514
        %v528 = vcombine.low %v520, %v522
        %v529 = vcombine.high %v520, %v522
        %v530 = vcombine.low %v521, %v523
        %v531 = vcombine.high %v521, %v523
        %v532 = vrot.slane %v528, 7
        %v533 = vrot.slane %v528, 1
        %v534 = vrot.slane %v528, 2
        %v535 = vrot.slane %v529, 7
        %v536 = vrot.slane %v529, 1
        %v537 = vrot.slane %v529, 2
        %v538 = vrot.slane %v530, 7
        %v539 = vrot.slane %v530, 1
        %v540 = vrot.slane %v530, 2
        %v541 = vrot.slane %v531, 7
        %v542 = vrot.slane %v531, 1
        %v543 = vrot.slane %v531, 2
        %v560 = vsel %vm458, %v532, 0.0
        %v561 = vsel %vm458, %v528, 0.0
        %v562 = vsel %vm458, %v533, 0.0
        %v563 = vsel %vm458, %v534, 0.0
        %v564 = vsel %vm458, %v535, 0.0
        %v565 = vsel %vm458, %v529, 0.0
        %v566 = vsel %vm458, %v536, 0.0
        %v567 = vsel %vm458, %v537, 0.0
        %v568 = vsel %vm458, %v538, 0.0
        %v569 = vsel %vm458, %v530, 0.0
        %v570 = vsel %vm458, %v539, 0.0
        %v571 = vsel %vm458, %v540, 0.0
        %v572 = vsel %vm458, %v541, 0.0
        %v573 = vsel %vm458, %v531, 0.0
        %v574 = vsel %vm458, %v542, 0.0
        %v575 = vsel %vm458, %v543, 0.0
        %577 = vset.pattern.permute.xlu0 4
        %578 = vperm.xlu0 %577, %v440
        %v579 = vpop.permute.xlu0 %578
        %582 = vset.pattern.permute.xlu0 4
        %583 = vperm.xlu0 %582, %v441
        %v584 = vpop.permute.xlu0 %583
        %v586 = vmul.f32 %v434, %v579
        %v587 = vmul.f32 %v435, %v579
        %v588 = vmul.f32 %v436, %v584
        %v589 = vmul.f32 %v437, %v584
        %v590 = vld [vmem:[%s5] sm:$0xff]
        %v591 = vld [vmem:[%s5 + $0x8] sm:$0xff]
        %593 = vset.pattern.permute.xlu0 0
        %594 = vperm.xlu0 %593, %v590
        %v595 = vpop.permute.xlu0 %594
        %598 = vset.pattern.permute.xlu0 0
        %599 = vperm.xlu0 %598, %v591
        %v600 = vpop.permute.xlu0 %599
        %v602 = vadd.f32 %v586, %v595
        %v603 = vadd.f32 %v587, %v595
        %v604 = vadd.f32 %v588, %v600
        %v605 = vadd.f32 %v589, %v600
        %606 = vset.pattern.permute.xlu0 1
        %607 = vperm.xlu0 %606, %v440
        %v608 = vpop.permute.xlu0 %607
        %609 = vset.pattern.permute.xlu0 1
        %610 = vperm.xlu0 %609, %v441
        %v611 = vpop.permute.xlu0 %610
        %v613 = vunpack.c.l.s4 839922192
        %v614 = vunpack.c.0.s8 %v613
        %v615 = vlaneseq
        %v616 = vshrl.u32 %v615, 7
        %v617 = vsub.s32 %v614, %v616
        %v618 = vrot.slane %v608, %v617
        %v620 = vunpack.c.l.s4 1985246804
        %v621 = vunpack.c.0.s8 %v620
        %v622 = vlaneseq
        %v623 = vshrl.u32 %v622, 7
        %v624 = vsub.s32 %v621, %v623
        %v625 = vrot.slane %v608, %v624
        %v627 = vunpack.c.l.s4 839922192
        %v628 = vunpack.c.0.s8 %v627
        %v629 = vlaneseq
        %v630 = vshrl.u32 %v629, 7
        %v631 = vsub.s32 %v628, %v630
        %v632 = vrot.slane %v611, %v631
        %v634 = vunpack.c.l.s4 1985246804
        %v635 = vunpack.c.0.s8 %v634
        %v636 = vlaneseq
        %v637 = vshrl.u32 %v636, 7
        %v638 = vsub.s32 %v635, %v637
        %v639 = vrot.slane %v611, %v638
        %v640 = vrot.slane %v618, 1
        %v641 = vrot.slane %v618, 2
        %v642 = vrot.slane %v618, 3
        %v643 = vrot.slane %v625, 1
        %v644 = vrot.slane %v625, 2
        %v645 = vrot.slane %v625, 3
        %v646 = vrot.slane %v632, 1
        %v647 = vrot.slane %v632, 2
        %v648 = vrot.slane %v632, 3
        %v649 = vrot.slane %v639, 1
        %v650 = vrot.slane %v639, 2
        %v651 = vrot.slane %v639, 3
        %v668 = vmul.f32 %v495, %v618
        %v669 = vmul.f32 %v496, %v640
        %v670 = vmul.f32 %v497, %v641
        %v671 = vmul.f32 %v498, %v642
        %v672 = vmul.f32 %v499, %v625
        %v673 = vmul.f32 %v500, %v643
        %v674 = vmul.f32 %v501, %v644
        %v675 = vmul.f32 %v502, %v645
        %v676 = vmul.f32 %v503, %v632
        %v677 = vmul.f32 %v504, %v646
        %v678 = vmul.f32 %v505, %v647
        %v679 = vmul.f32 %v506, %v648
        %v680 = vmul.f32 %v507, %v639
        %v681 = vmul.f32 %v508, %v649
        %v682 = vmul.f32 %v509, %v650
        %v683 = vmul.f32 %v510, %v651
        %v700 = vlaneseq
        %v701 = vshrl.u32 %v700, 7
        %v702 = vsub.s32 0, %v701
        %v703 = vrot.slane %v668, %v702
        %v704 = vlaneseq
        %v705 = vshrl.u32 %v704, 7
        %v706 = vsub.s32 4, %v705
        %v707 = vrot.slane %v668, %v706
        %v708 = vlaneseq
        %v709 = vshrl.u32 %v708, 7
        %v710 = vsub.s32 0, %v709
        %v711 = vrot.slane %v669, %v710
        %v712 = vlaneseq
        %v713 = vshrl.u32 %v712, 7
        %v714 = vsub.s32 4, %v713
        %v715 = vrot.slane %v669, %v714
        %v716 = vlaneseq
        %v717 = vshrl.u32 %v716, 7
        %v718 = vsub.s32 0, %v717
        %v719 = vrot.slane %v670, %v718
        %v720 = vlaneseq
        %v721 = vshrl.u32 %v720, 7
        %v722 = vsub.s32 4, %v721
        %v723 = vrot.slane %v670, %v722
        %v724 = vlaneseq
        %v725 = vshrl.u32 %v724, 7
        %v726 = vsub.s32 0, %v725
        %v727 = vrot.slane %v671, %v726
        %v728 = vlaneseq
        %v729 = vshrl.u32 %v728, 7
        %v730 = vsub.s32 4, %v729
        %v731 = vrot.slane %v671, %v730
        %v732 = vlaneseq
        %v733 = vshrl.u32 %v732, 7
        %v734 = vsub.s32 0, %v733
        %v735 = vrot.slane %v672, %v734
        %v736 = vlaneseq
        %v737 = vshrl.u32 %v736, 7
        %v738 = vsub.s32 4, %v737
        %v739 = vrot.slane %v672, %v738
        %v740 = vlaneseq
        %v741 = vshrl.u32 %v740, 7
        %v742 = vsub.s32 0, %v741
        %v743 = vrot.slane %v673, %v742
        %v744 = vlaneseq
        %v745 = vshrl.u32 %v744, 7
        %v746 = vsub.s32 4, %v745
        %v747 = vrot.slane %v673, %v746
        %v748 = vlaneseq
        %v749 = vshrl.u32 %v748, 7
        %v750 = vsub.s32 0, %v749
        %v751 = vrot.slane %v674, %v750
        %v752 = vlaneseq
        %v753 = vshrl.u32 %v752, 7
        %v754 = vsub.s32 4, %v753
        %v755 = vrot.slane %v674, %v754
        %v756 = vlaneseq
        %v757 = vshrl.u32 %v756, 7
        %v758 = vsub.s32 0, %v757
        %v759 = vrot.slane %v675, %v758
        %v760 = vlaneseq
        %v761 = vshrl.u32 %v760, 7
        %v762 = vsub.s32 4, %v761
        %v763 = vrot.slane %v675, %v762
        %v764 = vlaneseq
        %v765 = vshrl.u32 %v764, 7
        %v766 = vsub.s32 0, %v765
        %v767 = vrot.slane %v676, %v766
        %v768 = vlaneseq
        %v769 = vshrl.u32 %v768, 7
        %v770 = vsub.s32 4, %v769
        %v771 = vrot.slane %v676, %v770
        %v772 = vlaneseq
        %v773 = vshrl.u32 %v772, 7
        %v774 = vsub.s32 0, %v773
        %v775 = vrot.slane %v677, %v774
        %v776 = vlaneseq
        %v777 = vshrl.u32 %v776, 7
        %v778 = vsub.s32 4, %v777
        %v779 = vrot.slane %v677, %v778
        %v780 = vlaneseq
        %v781 = vshrl.u32 %v780, 7
        %v782 = vsub.s32 0, %v781
        %v783 = vrot.slane %v678, %v782
        %v784 = vlaneseq
        %v785 = vshrl.u32 %v784, 7
        %v786 = vsub.s32 4, %v785
        %v787 = vrot.slane %v678, %v786
        %v788 = vlaneseq
        %v789 = vshrl.u32 %v788, 7
        %v790 = vsub.s32 0, %v789
        %v791 = vrot.slane %v679, %v790
        %v792 = vlaneseq
        %v793 = vshrl.u32 %v792, 7
        %v794 = vsub.s32 4, %v793
        %v795 = vrot.slane %v679, %v794
        %v796 = vlaneseq
        %v797 = vshrl.u32 %v796, 7
        %v798 = vsub.s32 0, %v797
        %v799 = vrot.slane %v680, %v798
        %v800 = vlaneseq
        %v801 = vshrl.u32 %v800, 7
        %v802 = vsub.s32 4, %v801
        %v803 = vrot.slane %v680, %v802
        %v804 = vlaneseq
        %v805 = vshrl.u32 %v804, 7
        %v806 = vsub.s32 0, %v805
        %v807 = vrot.slane %v681, %v806
        %v808 = vlaneseq
        %v809 = vshrl.u32 %v808, 7
        %v810 = vsub.s32 4, %v809
        %v811 = vrot.slane %v681, %v810
        %v812 = vlaneseq
        %v813 = vshrl.u32 %v812, 7
        %v814 = vsub.s32 0, %v813
        %v815 = vrot.slane %v682, %v814
        %v816 = vlaneseq
        %v817 = vshrl.u32 %v816, 7
        %v818 = vsub.s32 4, %v817
        %v819 = vrot.slane %v682, %v818
        %v820 = vlaneseq
        %v821 = vshrl.u32 %v820, 7
        %v822 = vsub.s32 0, %v821
        %v823 = vrot.slane %v683, %v822
        %v824 = vlaneseq
        %v825 = vshrl.u32 %v824, 7
        %v826 = vsub.s32 4, %v825
        %v827 = vrot.slane %v683, %v826
        %vm828 = vcmask 1041409
        %v829 = vsel %vm828, %v711, %v703
        %vm830 = vcmask 1042434
        %v831 = vsel %vm830, %v719, %v829
        %vm832 = vcmask 1043459
        %v833 = vsel %vm832, %v727, %v831
        %vm834 = vcmask 1044484
        %v835 = vsel %vm834, %v735, %v833
        %vm836 = vcmask 1045509
        %v837 = vsel %vm836, %v743, %v835
        %vm838 = vcmask 1046534
        %v839 = vsel %vm838, %v751, %v837
        %vm840 = vcmask 1047559
        %v841 = vsel %vm840, %v759, %v839
        %v842 = vsel %vm828, %v715, %v707
        %v843 = vsel %vm830, %v723, %v842
        %v844 = vsel %vm832, %v731, %v843
        %v845 = vsel %vm834, %v739, %v844
        %v846 = vsel %vm836, %v747, %v845
        %v847 = vsel %vm838, %v755, %v846
        %v848 = vsel %vm840, %v763, %v847
        %v849 = vsel %vm828, %v775, %v767
        %v850 = vsel %vm830, %v783, %v849
        %v851 = vsel %vm832, %v791, %v850
        %v852 = vsel %vm834, %v799, %v851
        %v853 = vsel %vm836, %v807, %v852
        %v854 = vsel %vm838, %v815, %v853
        %v855 = vsel %vm840, %v823, %v854
        %v856 = vsel %vm828, %v779, %v771
        %v857 = vsel %vm830, %v787, %v856
        %v858 = vsel %vm832, %v795, %v857
        %v859 = vsel %vm834, %v803, %v858
        %v860 = vsel %vm836, %v811, %v859
        %v861 = vsel %vm838, %v819, %v860
        %v862 = vsel %vm840, %v827, %v861
        %v867 = vadd.f32 %v602, %v841
        %v868 = vadd.f32 %v603, %v848
        %v869 = vadd.f32 %v604, %v855
        %v870 = vadd.f32 %v605, %v862
        %871 = vset.pattern.permute.xlu0 7
        %872 = vperm.xlu0 %871, %v440
        %v873 = vpop.permute.xlu0 %872
        %874 = vset.pattern.permute.xlu0 7
        %875 = vperm.xlu0 %874, %v441
        %v876 = vpop.permute.xlu0 %875
        %v878 = vunpack.c.l.s4 839922192
        %v879 = vunpack.c.0.s8 %v878
        %v880 = vlaneseq
        %v881 = vshrl.u32 %v880, 7
        %v882 = vsub.s32 %v879, %v881
        %v883 = vrot.slane %v873, %v882
        %v885 = vunpack.c.l.s4 1985246804
        %v886 = vunpack.c.0.s8 %v885
        %v887 = vlaneseq
        %v888 = vshrl.u32 %v887, 7
        %v889 = vsub.s32 %v886, %v888
        %v890 = vrot.slane %v873, %v889
        %v892 = vunpack.c.l.s4 839922192
        %v893 = vunpack.c.0.s8 %v892
        %v894 = vlaneseq
        %v895 = vshrl.u32 %v894, 7
        %v896 = vsub.s32 %v893, %v895
        %v897 = vrot.slane %v876, %v896
        %v899 = vunpack.c.l.s4 1985246804
        %v900 = vunpack.c.0.s8 %v899
        %v901 = vlaneseq
        %v902 = vshrl.u32 %v901, 7
        %v903 = vsub.s32 %v900, %v902
        %v904 = vrot.slane %v876, %v903
        %v905 = vrot.slane %v883, 7
        %v906 = vrot.slane %v883, 1
        %v907 = vrot.slane %v883, 2
        %v908 = vrot.slane %v890, 7
        %v909 = vrot.slane %v890, 1
        %v910 = vrot.slane %v890, 2
        %v911 = vrot.slane %v897, 7
        %v912 = vrot.slane %v897, 1
        %v913 = vrot.slane %v897, 2
        %v914 = vrot.slane %v904, 7
        %v915 = vrot.slane %v904, 1
        %v916 = vrot.slane %v904, 2
        %v933 = vmul.f32 %v560, %v905
        %v934 = vmul.f32 %v561, %v883
        %v935 = vmul.f32 %v562, %v906
        %v936 = vmul.f32 %v563, %v907
        %v937 = vmul.f32 %v564, %v908
        %v938 = vmul.f32 %v565, %v890
        %v939 = vmul.f32 %v566, %v909
        %v940 = vmul.f32 %v567, %v910
        %v941 = vmul.f32 %v568, %v911
        %v942 = vmul.f32 %v569, %v897
        %v943 = vmul.f32 %v570, %v912
        %v944 = vmul.f32 %v571, %v913
        %v945 = vmul.f32 %v572, %v914
        %v946 = vmul.f32 %v573, %v904
        %v947 = vmul.f32 %v574, %v915
        %v948 = vmul.f32 %v575, %v916
        %v965 = vlaneseq
        %v966 = vshrl.u32 %v965, 7
        %v967 = vsub.s32 1, %v966
        %v968 = vrot.slane %v933, %v967
        %v969 = vlaneseq
        %v970 = vshrl.u32 %v969, 7
        %v971 = vsub.s32 5, %v970
        %v972 = vrot.slane %v933, %v971
        %v973 = vlaneseq
        %v974 = vshrl.u32 %v973, 7
        %v975 = vsub.s32 1, %v974
        %v976 = vrot.slane %v934, %v975
        %v977 = vlaneseq
        %v978 = vshrl.u32 %v977, 7
        %v979 = vsub.s32 5, %v978
        %v980 = vrot.slane %v934, %v979
        %v981 = vlaneseq
        %v982 = vshrl.u32 %v981, 7
        %v983 = vsub.s32 1, %v982
        %v984 = vrot.slane %v935, %v983
        %v985 = vlaneseq
        %v986 = vshrl.u32 %v985, 7
        %v987 = vsub.s32 5, %v986
        %v988 = vrot.slane %v935, %v987
        %v989 = vlaneseq
        %v990 = vshrl.u32 %v989, 7
        %v991 = vsub.s32 1, %v990
        %v992 = vrot.slane %v936, %v991
        %v993 = vlaneseq
        %v994 = vshrl.u32 %v993, 7
        %v995 = vsub.s32 5, %v994
        %v996 = vrot.slane %v936, %v995
        %v997 = vlaneseq
        %v998 = vshrl.u32 %v997, 7
        %v999 = vsub.s32 1, %v998
        %v1000 = vrot.slane %v937, %v999
        %v1001 = vlaneseq
        %v1002 = vshrl.u32 %v1001, 7
        %v1003 = vsub.s32 5, %v1002
        %v1004 = vrot.slane %v937, %v1003
        %v1005 = vlaneseq
        %v1006 = vshrl.u32 %v1005, 7
        %v1007 = vsub.s32 1, %v1006
        %v1008 = vrot.slane %v938, %v1007
        %v1009 = vlaneseq
        %v1010 = vshrl.u32 %v1009, 7
        %v1011 = vsub.s32 5, %v1010
        %v1012 = vrot.slane %v938, %v1011
        %v1013 = vlaneseq
        %v1014 = vshrl.u32 %v1013, 7
        %v1015 = vsub.s32 1, %v1014
        %v1016 = vrot.slane %v939, %v1015
        %v1017 = vlaneseq
        %v1018 = vshrl.u32 %v1017, 7
        %v1019 = vsub.s32 5, %v1018
        %v1020 = vrot.slane %v939, %v1019
        %v1021 = vlaneseq
        %v1022 = vshrl.u32 %v1021, 7
        %v1023 = vsub.s32 1, %v1022
        %v1024 = vrot.slane %v940, %v1023
        %v1025 = vlaneseq
        %v1026 = vshrl.u32 %v1025, 7
        %v1027 = vsub.s32 5, %v1026
        %v1028 = vrot.slane %v940, %v1027
        %v1029 = vlaneseq
        %v1030 = vshrl.u32 %v1029, 7
        %v1031 = vsub.s32 1, %v1030
        %v1032 = vrot.slane %v941, %v1031
        %v1033 = vlaneseq
        %v1034 = vshrl.u32 %v1033, 7
        %v1035 = vsub.s32 5, %v1034
        %v1036 = vrot.slane %v941, %v1035
        %v1037 = vlaneseq
        %v1038 = vshrl.u32 %v1037, 7
        %v1039 = vsub.s32 1, %v1038
        %v1040 = vrot.slane %v942, %v1039
        %v1041 = vlaneseq
        %v1042 = vshrl.u32 %v1041, 7
        %v1043 = vsub.s32 5, %v1042
        %v1044 = vrot.slane %v942, %v1043
        %v1045 = vlaneseq
        %v1046 = vshrl.u32 %v1045, 7
        %v1047 = vsub.s32 1, %v1046
        %v1048 = vrot.slane %v943, %v1047
        %v1049 = vlaneseq
        %v1050 = vshrl.u32 %v1049, 7
        %v1051 = vsub.s32 5, %v1050
        %v1052 = vrot.slane %v943, %v1051
        %v1053 = vlaneseq
        %v1054 = vshrl.u32 %v1053, 7
        %v1055 = vsub.s32 1, %v1054
        %v1056 = vrot.slane %v944, %v1055
        %v1057 = vlaneseq
        %v1058 = vshrl.u32 %v1057, 7
        %v1059 = vsub.s32 5, %v1058
        %v1060 = vrot.slane %v944, %v1059
        %v1061 = vlaneseq
        %v1062 = vshrl.u32 %v1061, 7
        %v1063 = vsub.s32 1, %v1062
        %v1064 = vrot.slane %v945, %v1063
        %v1065 = vlaneseq
        %v1066 = vshrl.u32 %v1065, 7
        %v1067 = vsub.s32 5, %v1066
        %v1068 = vrot.slane %v945, %v1067
        %v1069 = vlaneseq
        %v1070 = vshrl.u32 %v1069, 7
        %v1071 = vsub.s32 1, %v1070
        %v1072 = vrot.slane %v946, %v1071
        %v1073 = vlaneseq
        %v1074 = vshrl.u32 %v1073, 7
        %v1075 = vsub.s32 5, %v1074
        %v1076 = vrot.slane %v946, %v1075
        %v1077 = vlaneseq
        %v1078 = vshrl.u32 %v1077, 7
        %v1079 = vsub.s32 1, %v1078
        %v1080 = vrot.slane %v947, %v1079
        %v1081 = vlaneseq
        %v1082 = vshrl.u32 %v1081, 7
        %v1083 = vsub.s32 5, %v1082
        %v1084 = vrot.slane %v947, %v1083
        %v1085 = vlaneseq
        %v1086 = vshrl.u32 %v1085, 7
        %v1087 = vsub.s32 1, %v1086
        %v1088 = vrot.slane %v948, %v1087
        %v1089 = vlaneseq
        %v1090 = vshrl.u32 %v1089, 7
        %v1091 = vsub.s32 5, %v1090
        %v1092 = vrot.slane %v948, %v1091
        %v1093 = vsel %vm828, %v976, %v968
        %v1094 = vsel %vm830, %v984, %v1093
        %v1095 = vsel %vm832, %v992, %v1094
        %v1096 = vsel %vm834, %v1000, %v1095
        %v1097 = vsel %vm836, %v1008, %v1096
        %v1098 = vsel %vm838, %v1016, %v1097
        %v1099 = vsel %vm840, %v1024, %v1098
        %v1100 = vsel %vm828, %v980, %v972
        %v1101 = vsel %vm830, %v988, %v1100
        %v1102 = vsel %vm832, %v996, %v1101
        %v1103 = vsel %vm834, %v1004, %v1102
        %v1104 = vsel %vm836, %v1012, %v1103
        %v1105 = vsel %vm838, %v1020, %v1104
        %v1106 = vsel %vm840, %v1028, %v1105
        %v1107 = vsel %vm828, %v1040, %v1032
        %v1108 = vsel %vm830, %v1048, %v1107
        %v1109 = vsel %vm832, %v1056, %v1108
        %v1110 = vsel %vm834, %v1064, %v1109
        %v1111 = vsel %vm836, %v1072, %v1110
        %v1112 = vsel %vm838, %v1080, %v1111
        %v1113 = vsel %vm840, %v1088, %v1112
        %v1114 = vsel %vm828, %v1044, %v1036
        %v1115 = vsel %vm830, %v1052, %v1114
        %v1116 = vsel %vm832, %v1060, %v1115
        %v1117 = vsel %vm834, %v1068, %v1116
        %v1118 = vsel %vm836, %v1076, %v1117
        %v1119 = vsel %vm838, %v1084, %v1118
        %v1120 = vsel %vm840, %v1092, %v1119
        %v1125 = vadd.f32 %v867, %v1099
        %v1126 = vadd.f32 %v868, %v1106
        %v1127 = vadd.f32 %v869, %v1113
        %v1128 = vadd.f32 %v870, %v1120
        %v1145 = vlaneseq
        %v1146 = vshrl.u32 %v1145, 7
        %v1147 = vsub.s32 0, %v1146
        %v1148 = vrot.slane %v495, %v1147
        %v1149 = vlaneseq
        %v1150 = vshrl.u32 %v1149, 7
        %v1151 = vsub.s32 4, %v1150
        %v1152 = vrot.slane %v495, %v1151
        %v1153 = vlaneseq
        %v1154 = vshrl.u32 %v1153, 7
        %v1155 = vsub.s32 0, %v1154
        %v1156 = vrot.slane %v496, %v1155
        %v1157 = vlaneseq
        %v1158 = vshrl.u32 %v1157, 7
        %v1159 = vsub.s32 4, %v1158
        %v1160 = vrot.slane %v496, %v1159
        %v1161 = vlaneseq
        %v1162 = vshrl.u32 %v1161, 7
        %v1163 = vsub.s32 0, %v1162
        %v1164 = vrot.slane %v497, %v1163
        %v1165 = vlaneseq
        %v1166 = vshrl.u32 %v1165, 7
        %v1167 = vsub.s32 4, %v1166
        %v1168 = vrot.slane %v497, %v1167
        %v1169 = vlaneseq
        %v1170 = vshrl.u32 %v1169, 7
        %v1171 = vsub.s32 0, %v1170
        %v1172 = vrot.slane %v498, %v1171
        %v1173 = vlaneseq
        %v1174 = vshrl.u32 %v1173, 7
        %v1175 = vsub.s32 4, %v1174
        %v1176 = vrot.slane %v498, %v1175
        %v1177 = vlaneseq
        %v1178 = vshrl.u32 %v1177, 7
        %v1179 = vsub.s32 0, %v1178
        %v1180 = vrot.slane %v499, %v1179
        %v1181 = vlaneseq
        %v1182 = vshrl.u32 %v1181, 7
        %v1183 = vsub.s32 4, %v1182
        %v1184 = vrot.slane %v499, %v1183
        %v1185 = vlaneseq
        %v1186 = vshrl.u32 %v1185, 7
        %v1187 = vsub.s32 0, %v1186
        %v1188 = vrot.slane %v500, %v1187
        %v1189 = vlaneseq
        %v1190 = vshrl.u32 %v1189, 7
        %v1191 = vsub.s32 4, %v1190
        %v1192 = vrot.slane %v500, %v1191
        %v1193 = vlaneseq
        %v1194 = vshrl.u32 %v1193, 7
        %v1195 = vsub.s32 0, %v1194
        %v1196 = vrot.slane %v501, %v1195
        %v1197 = vlaneseq
        %v1198 = vshrl.u32 %v1197, 7
        %v1199 = vsub.s32 4, %v1198
        %v1200 = vrot.slane %v501, %v1199
        %v1201 = vlaneseq
        %v1202 = vshrl.u32 %v1201, 7
        %v1203 = vsub.s32 0, %v1202
        %v1204 = vrot.slane %v502, %v1203
        %v1205 = vlaneseq
        %v1206 = vshrl.u32 %v1205, 7
        %v1207 = vsub.s32 4, %v1206
        %v1208 = vrot.slane %v502, %v1207
        %v1209 = vlaneseq
        %v1210 = vshrl.u32 %v1209, 7
        %v1211 = vsub.s32 0, %v1210
        %v1212 = vrot.slane %v503, %v1211
        %v1213 = vlaneseq
        %v1214 = vshrl.u32 %v1213, 7
        %v1215 = vsub.s32 4, %v1214
        %v1216 = vrot.slane %v503, %v1215
        %v1217 = vlaneseq
        %v1218 = vshrl.u32 %v1217, 7
        %v1219 = vsub.s32 0, %v1218
        %v1220 = vrot.slane %v504, %v1219
        %v1221 = vlaneseq
        %v1222 = vshrl.u32 %v1221, 7
        %v1223 = vsub.s32 4, %v1222
        %v1224 = vrot.slane %v504, %v1223
        %v1225 = vlaneseq
        %v1226 = vshrl.u32 %v1225, 7
        %v1227 = vsub.s32 0, %v1226
        %v1228 = vrot.slane %v505, %v1227
        %v1229 = vlaneseq
        %v1230 = vshrl.u32 %v1229, 7
        %v1231 = vsub.s32 4, %v1230
        %v1232 = vrot.slane %v505, %v1231
        %v1233 = vlaneseq
        %v1234 = vshrl.u32 %v1233, 7
        %v1235 = vsub.s32 0, %v1234
        %v1236 = vrot.slane %v506, %v1235
        %v1237 = vlaneseq
        %v1238 = vshrl.u32 %v1237, 7
        %v1239 = vsub.s32 4, %v1238
        %v1240 = vrot.slane %v506, %v1239
        %v1241 = vlaneseq
        %v1242 = vshrl.u32 %v1241, 7
        %v1243 = vsub.s32 0, %v1242
        %v1244 = vrot.slane %v507, %v1243
        %v1245 = vlaneseq
        %v1246 = vshrl.u32 %v1245, 7
        %v1247 = vsub.s32 4, %v1246
        %v1248 = vrot.slane %v507, %v1247
        %v1249 = vlaneseq
        %v1250 = vshrl.u32 %v1249, 7
        %v1251 = vsub.s32 0, %v1250
        %v1252 = vrot.slane %v508, %v1251
        %v1253 = vlaneseq
        %v1254 = vshrl.u32 %v1253, 7
        %v1255 = vsub.s32 4, %v1254
        %v1256 = vrot.slane %v508, %v1255
        %v1257 = vlaneseq
        %v1258 = vshrl.u32 %v1257, 7
        %v1259 = vsub.s32 0, %v1258
        %v1260 = vrot.slane %v509, %v1259
        %v1261 = vlaneseq
        %v1262 = vshrl.u32 %v1261, 7
        %v1263 = vsub.s32 4, %v1262
        %v1264 = vrot.slane %v509, %v1263
        %v1265 = vlaneseq
        %v1266 = vshrl.u32 %v1265, 7
        %v1267 = vsub.s32 0, %v1266
        %v1268 = vrot.slane %v510, %v1267
        %v1269 = vlaneseq
        %v1270 = vshrl.u32 %v1269, 7
        %v1271 = vsub.s32 4, %v1270
        %v1272 = vrot.slane %v510, %v1271
        %v1273 = vsel %vm828, %v1156, %v1148
        %v1274 = vsel %vm830, %v1164, %v1273
        %v1275 = vsel %vm832, %v1172, %v1274
        %v1276 = vsel %vm834, %v1180, %v1275
        %v1277 = vsel %vm836, %v1188, %v1276
        %v1278 = vsel %vm838, %v1196, %v1277
        %v1279 = vsel %vm840, %v1204, %v1278
        %v1280 = vsel %vm828, %v1160, %v1152
        %v1281 = vsel %vm830, %v1168, %v1280
        %v1282 = vsel %vm832, %v1176, %v1281
        %v1283 = vsel %vm834, %v1184, %v1282
        %v1284 = vsel %vm836, %v1192, %v1283
        %v1285 = vsel %vm838, %v1200, %v1284
        %v1286 = vsel %vm840, %v1208, %v1285
        %v1287 = vsel %vm828, %v1220, %v1212
        %v1288 = vsel %vm830, %v1228, %v1287
        %v1289 = vsel %vm832, %v1236, %v1288
        %v1290 = vsel %vm834, %v1244, %v1289
        %v1291 = vsel %vm836, %v1252, %v1290
        %v1292 = vsel %vm838, %v1260, %v1291
        %v1293 = vsel %vm840, %v1268, %v1292
        %v1294 = vsel %vm828, %v1224, %v1216
        %v1295 = vsel %vm830, %v1232, %v1294
        %v1296 = vsel %vm832, %v1240, %v1295
        %v1297 = vsel %vm834, %v1248, %v1296
        %v1298 = vsel %vm836, %v1256, %v1297
        %v1299 = vsel %vm838, %v1264, %v1298
        %v1300 = vsel %vm840, %v1272, %v1299
        %1305 = vrot.lane.b32.xlu0 %v1279, 1
        %v1306 = vpop.permute.xlu0 %1305
        %1307 = vrot.lane.b32.xlu0 %v1293, 1
        %v1308 = vpop.permute.xlu0 %1307
        %1309 = vrot.lane.b32.xlu0 %v1286, 1
        %v1310 = vpop.permute.xlu0 %1309
        %1311 = vrot.lane.b32.xlu0 %v1300, 1
        %v1312 = vpop.permute.xlu0 %1311
        %vm1313 = vcmp.lt.s32.totalorder %v451, 1
        %v1314 = vsel %vm1313, %v1306, %v1310
        %v1315 = vsel %vm1313, %v1308, %v1312
        %v1316 = vsel %vm1313, %v1310, %v1306
        %v1317 = vsel %vm1313, %v1312, %v1308
        %v1322 = vcombine.low %v1316, %v1314
        %v1323 = vcombine.high %v1316, %v1314
        %v1324 = vcombine.low %v1317, %v1315
        %v1325 = vcombine.high %v1317, %v1315
        %v1326 = vrot.slane %v1322, 6
        %v1327 = vrot.slane %v1322, 7
        %v1328 = vrot.slane %v1322, 1
        %v1329 = vrot.slane %v1323, 6
        %v1330 = vrot.slane %v1323, 7
        %v1331 = vrot.slane %v1323, 1
        %v1332 = vrot.slane %v1324, 6
        %v1333 = vrot.slane %v1324, 7
        %v1334 = vrot.slane %v1324, 1
        %v1335 = vrot.slane %v1325, 6
        %v1336 = vrot.slane %v1325, 7
        %v1337 = vrot.slane %v1325, 1
        %v1354 = vsel %vm458, %v1326, 0.0
        %v1355 = vsel %vm458, %v1327, 0.0
        %v1356 = vsel %vm458, %v1322, 0.0
        %v1357 = vsel %vm458, %v1328, 0.0
        %v1358 = vsel %vm458, %v1329, 0.0
        %v1359 = vsel %vm458, %v1330, 0.0
        %v1360 = vsel %vm458, %v1323, 0.0
        %v1361 = vsel %vm458, %v1331, 0.0
        %v1362 = vsel %vm458, %v1332, 0.0
        %v1363 = vsel %vm458, %v1333, 0.0
        %v1364 = vsel %vm458, %v1324, 0.0
        %v1365 = vsel %vm458, %v1334, 0.0
        %v1366 = vsel %vm458, %v1335, 0.0
        %v1367 = vsel %vm458, %v1336, 0.0
        %v1368 = vsel %vm458, %v1325, 0.0
        %v1369 = vsel %vm458, %v1337, 0.0
        %1370 = vrot.lane.b32.xlu0 %v1279, 127
        %v1371 = vpop.permute.xlu0 %1370
        %1372 = vrot.lane.b32.xlu0 %v1293, 127
        %v1373 = vpop.permute.xlu0 %1372
        %1374 = vrot.lane.b32.xlu0 %v1286, 127
        %v1375 = vpop.permute.xlu0 %1374
        %1376 = vrot.lane.b32.xlu0 %v1300, 127
        %v1377 = vpop.permute.xlu0 %1376
        %vm1378 = vcmp.lt.s32.totalorder %v451, 127
        %v1379 = vsel %vm1378, %v1371, %v1375
        %v1380 = vsel %vm1378, %v1373, %v1377
        %v1381 = vsel %vm1378, %v1375, %v1371
        %v1382 = vsel %vm1378, %v1377, %v1373
        %v1387 = vcombine.low %v1379, %v1381
        %v1388 = vcombine.high %v1379, %v1381
        %v1389 = vcombine.low %v1380, %v1382
        %v1390 = vcombine.high %v1380, %v1382
        %v1391 = vrot.slane %v1387, 5
        %v1392 = vrot.slane %v1387, 6
        %v1393 = vrot.slane %v1387, 7
        %v1394 = vrot.slane %v1388, 5
        %v1395 = vrot.slane %v1388, 6
        %v1396 = vrot.slane %v1388, 7
        %v1397 = vrot.slane %v1389, 5
        %v1398 = vrot.slane %v1389, 6
        %v1399 = vrot.slane %v1389, 7
        %v1400 = vrot.slane %v1390, 5
        %v1401 = vrot.slane %v1390, 6
        %v1402 = vrot.slane %v1390, 7
        %v1419 = vsel %vm458, %v1391, 0.0
        %v1420 = vsel %vm458, %v1392, 0.0
        %v1421 = vsel %vm458, %v1393, 0.0
        %v1422 = vsel %vm458, %v1387, 0.0
        %v1423 = vsel %vm458, %v1394, 0.0
        %v1424 = vsel %vm458, %v1395, 0.0
        %v1425 = vsel %vm458, %v1396, 0.0
        %v1426 = vsel %vm458, %v1388, 0.0
        %v1427 = vsel %vm458, %v1397, 0.0
        %v1428 = vsel %vm458, %v1398, 0.0
        %v1429 = vsel %vm458, %v1399, 0.0
        %v1430 = vsel %vm458, %v1389, 0.0
        %v1431 = vsel %vm458, %v1400, 0.0
        %v1432 = vsel %vm458, %v1401, 0.0
        %v1433 = vsel %vm458, %v1402, 0.0
        %v1434 = vsel %vm458, %v1390, 0.0
        %1435 = vset.pattern.permute.xlu0 0
        %1436 = vperm.xlu0 %1435, %v440
        %v1437 = vpop.permute.xlu0 %1436
        %1438 = vset.pattern.permute.xlu0 0
        %1439 = vperm.xlu0 %1438, %v441
        %v1440 = vpop.permute.xlu0 %1439
        %v1442 = vunpack.c.l.s4 839922192
        %v1443 = vunpack.c.0.s8 %v1442
        %v1444 = vlaneseq
        %v1445 = vshrl.u32 %v1444, 7
        %v1446 = vsub.s32 %v1443, %v1445
        %v1447 = vrot.slane %v1437, %v1446
        %v1449 = vunpack.c.l.s4 1985246804
        %v1450 = vunpack.c.0.s8 %v1449
        %v1451 = vlaneseq
        %v1452 = vshrl.u32 %v1451, 7
        %v1453 = vsub.s32 %v1450, %v1452
        %v1454 = vrot.slane %v1437, %v1453
        %v1456 = vunpack.c.l.s4 839922192
        %v1457 = vunpack.c.0.s8 %v1456
        %v1458 = vlaneseq
        %v1459 = vshrl.u32 %v1458, 7
        %v1460 = vsub.s32 %v1457, %v1459
        %v1461 = vrot.slane %v1440, %v1460
        %v1463 = vunpack.c.l.s4 1985246804
        %v1464 = vunpack.c.0.s8 %v1463
        %v1465 = vlaneseq
        %v1466 = vshrl.u32 %v1465, 7
        %v1467 = vsub.s32 %v1464, %v1466
        %v1468 = vrot.slane %v1440, %v1467
        %v1469 = vrot.slane %v1447, 6
        %v1470 = vrot.slane %v1447, 7
        %v1471 = vrot.slane %v1447, 1
        %v1472 = vrot.slane %v1454, 6
        %v1473 = vrot.slane %v1454, 7
        %v1474 = vrot.slane %v1454, 1
        %v1475 = vrot.slane %v1461, 6
        %v1476 = vrot.slane %v1461, 7
        %v1477 = vrot.slane %v1461, 1
        %v1478 = vrot.slane %v1468, 6
        %v1479 = vrot.slane %v1468, 7
        %v1480 = vrot.slane %v1468, 1
        %v1497 = vmul.f32 %v1354, %v1469
        %v1498 = vmul.f32 %v1355, %v1470
        %v1499 = vmul.f32 %v1356, %v1447
        %v1500 = vmul.f32 %v1357, %v1471
        %v1501 = vmul.f32 %v1358, %v1472
        %v1502 = vmul.f32 %v1359, %v1473
        %v1503 = vmul.f32 %v1360, %v1454
        %v1504 = vmul.f32 %v1361, %v1474
        %v1505 = vmul.f32 %v1362, %v1475
        %v1506 = vmul.f32 %v1363, %v1476
        %v1507 = vmul.f32 %v1364, %v1461
        %v1508 = vmul.f32 %v1365, %v1477
        %v1509 = vmul.f32 %v1366, %v1478
        %v1510 = vmul.f32 %v1367, %v1479
        %v1511 = vmul.f32 %v1368, %v1468
        %v1512 = vmul.f32 %v1369, %v1480
        %v1529 = vlaneseq
        %v1530 = vshrl.u32 %v1529, 7
        %v1531 = vsub.s32 2, %v1530
        %v1532 = vrot.slane %v1497, %v1531
        %v1533 = vlaneseq
        %v1534 = vshrl.u32 %v1533, 7
        %v1535 = vsub.s32 6, %v1534
        %v1536 = vrot.slane %v1497, %v1535
        %v1537 = vlaneseq
        %v1538 = vshrl.u32 %v1537, 7
        %v1539 = vsub.s32 2, %v1538
        %v1540 = vrot.slane %v1498, %v1539
        %v1541 = vlaneseq
        %v1542 = vshrl.u32 %v1541, 7
        %v1543 = vsub.s32 6, %v1542
        %v1544 = vrot.slane %v1498, %v1543
        %v1545 = vlaneseq
        %v1546 = vshrl.u32 %v1545, 7
        %v1547 = vsub.s32 2, %v1546
        %v1548 = vrot.slane %v1499, %v1547
        %v1549 = vlaneseq
        %v1550 = vshrl.u32 %v1549, 7
        %v1551 = vsub.s32 6, %v1550
        %v1552 = vrot.slane %v1499, %v1551
        %v1553 = vlaneseq
        %v1554 = vshrl.u32 %v1553, 7
        %v1555 = vsub.s32 2, %v1554
        %v1556 = vrot.slane %v1500, %v1555
        %v1557 = vlaneseq
        %v1558 = vshrl.u32 %v1557, 7
        %v1559 = vsub.s32 6, %v1558
        %v1560 = vrot.slane %v1500, %v1559
        %v1561 = vlaneseq
        %v1562 = vshrl.u32 %v1561, 7
        %v1563 = vsub.s32 2, %v1562
        %v1564 = vrot.slane %v1501, %v1563
        %v1565 = vlaneseq
        %v1566 = vshrl.u32 %v1565, 7
        %v1567 = vsub.s32 6, %v1566
        %v1568 = vrot.slane %v1501, %v1567
        %v1569 = vlaneseq
        %v1570 = vshrl.u32 %v1569, 7
        %v1571 = vsub.s32 2, %v1570
        %v1572 = vrot.slane %v1502, %v1571
        %v1573 = vlaneseq
        %v1574 = vshrl.u32 %v1573, 7
        %v1575 = vsub.s32 6, %v1574
        %v1576 = vrot.slane %v1502, %v1575
        %v1577 = vlaneseq
        %v1578 = vshrl.u32 %v1577, 7
        %v1579 = vsub.s32 2, %v1578
        %v1580 = vrot.slane %v1503, %v1579
        %v1581 = vlaneseq
        %v1582 = vshrl.u32 %v1581, 7
        %v1583 = vsub.s32 6, %v1582
        %v1584 = vrot.slane %v1503, %v1583
        %v1585 = vlaneseq
        %v1586 = vshrl.u32 %v1585, 7
        %v1587 = vsub.s32 2, %v1586
        %v1588 = vrot.slane %v1504, %v1587
        %v1589 = vlaneseq
        %v1590 = vshrl.u32 %v1589, 7
        %v1591 = vsub.s32 6, %v1590
        %v1592 = vrot.slane %v1504, %v1591
        %v1593 = vlaneseq
        %v1594 = vshrl.u32 %v1593, 7
        %v1595 = vsub.s32 2, %v1594
        %v1596 = vrot.slane %v1505, %v1595
        %v1597 = vlaneseq
        %v1598 = vshrl.u32 %v1597, 7
        %v1599 = vsub.s32 6, %v1598
        %v1600 = vrot.slane %v1505, %v1599
        %v1601 = vlaneseq
        %v1602 = vshrl.u32 %v1601, 7
        %v1603 = vsub.s32 2, %v1602
        %v1604 = vrot.slane %v1506, %v1603
        %v1605 = vlaneseq
        %v1606 = vshrl.u32 %v1605, 7
        %v1607 = vsub.s32 6, %v1606
        %v1608 = vrot.slane %v1506, %v1607
        %v1609 = vlaneseq
        %v1610 = vshrl.u32 %v1609, 7
        %v1611 = vsub.s32 2, %v1610
        %v1612 = vrot.slane %v1507, %v1611
        %v1613 = vlaneseq
        %v1614 = vshrl.u32 %v1613, 7
        %v1615 = vsub.s32 6, %v1614
        %v1616 = vrot.slane %v1507, %v1615
        %v1617 = vlaneseq
        %v1618 = vshrl.u32 %v1617, 7
        %v1619 = vsub.s32 2, %v1618
        %v1620 = vrot.slane %v1508, %v1619
        %v1621 = vlaneseq
        %v1622 = vshrl.u32 %v1621, 7
        %v1623 = vsub.s32 6, %v1622
        %v1624 = vrot.slane %v1508, %v1623
        %v1625 = vlaneseq
        %v1626 = vshrl.u32 %v1625, 7
        %v1627 = vsub.s32 2, %v1626
        %v1628 = vrot.slane %v1509, %v1627
        %v1629 = vlaneseq
        %v1630 = vshrl.u32 %v1629, 7
        %v1631 = vsub.s32 6, %v1630
        %v1632 = vrot.slane %v1509, %v1631
        %v1633 = vlaneseq
        %v1634 = vshrl.u32 %v1633, 7
        %v1635 = vsub.s32 2, %v1634
        %v1636 = vrot.slane %v1510, %v1635
        %v1637 = vlaneseq
        %v1638 = vshrl.u32 %v1637, 7
        %v1639 = vsub.s32 6, %v1638
        %v1640 = vrot.slane %v1510, %v1639
        %v1641 = vlaneseq
        %v1642 = vshrl.u32 %v1641, 7
        %v1643 = vsub.s32 2, %v1642
        %v1644 = vrot.slane %v1511, %v1643
        %v1645 = vlaneseq
        %v1646 = vshrl.u32 %v1645, 7
        %v1647 = vsub.s32 6, %v1646
        %v1648 = vrot.slane %v1511, %v1647
        %v1649 = vlaneseq
        %v1650 = vshrl.u32 %v1649, 7
        %v1651 = vsub.s32 2, %v1650
        %v1652 = vrot.slane %v1512, %v1651
        %v1653 = vlaneseq
        %v1654 = vshrl.u32 %v1653, 7
        %v1655 = vsub.s32 6, %v1654
        %v1656 = vrot.slane %v1512, %v1655
        %v1657 = vsel %vm828, %v1540, %v1532
        %v1658 = vsel %vm830, %v1548, %v1657
        %v1659 = vsel %vm832, %v1556, %v1658
        %v1660 = vsel %vm834, %v1564, %v1659
        %v1661 = vsel %vm836, %v1572, %v1660
        %v1662 = vsel %vm838, %v1580, %v1661
        %v1663 = vsel %vm840, %v1588, %v1662
        %v1664 = vsel %vm828, %v1544, %v1536
        %v1665 = vsel %vm830, %v1552, %v1664
        %v1666 = vsel %vm832, %v1560, %v1665
        %v1667 = vsel %vm834, %v1568, %v1666
        %v1668 = vsel %vm836, %v1576, %v1667
        %v1669 = vsel %vm838, %v1584, %v1668
        %v1670 = vsel %vm840, %v1592, %v1669
        %v1671 = vsel %vm828, %v1604, %v1596
        %v1672 = vsel %vm830, %v1612, %v1671
        %v1673 = vsel %vm832, %v1620, %v1672
        %v1674 = vsel %vm834, %v1628, %v1673
        %v1675 = vsel %vm836, %v1636, %v1674
        %v1676 = vsel %vm838, %v1644, %v1675
        %v1677 = vsel %vm840, %v1652, %v1676
        %v1678 = vsel %vm828, %v1608, %v1600
        %v1679 = vsel %vm830, %v1616, %v1678
        %v1680 = vsel %vm832, %v1624, %v1679
        %v1681 = vsel %vm834, %v1632, %v1680
        %v1682 = vsel %vm836, %v1640, %v1681
        %v1683 = vsel %vm838, %v1648, %v1682
        %v1684 = vsel %vm840, %v1656, %v1683
        %v1689 = vadd.f32 %v1125, %v1663
        %v1690 = vadd.f32 %v1126, %v1670
        %v1691 = vadd.f32 %v1127, %v1677
        %v1692 = vadd.f32 %v1128, %v1684
        %1693 = vset.pattern.permute.xlu0 2
        %1694 = vperm.xlu0 %1693, %v440
        %v1695 = vpop.permute.xlu0 %1694
        %1696 = vset.pattern.permute.xlu0 2
        %1697 = vperm.xlu0 %1696, %v441
        %v1698 = vpop.permute.xlu0 %1697
        %v1700 = vunpack.c.l.s4 839922192
        %v1701 = vunpack.c.0.s8 %v1700
        %v1702 = vlaneseq
        %v1703 = vshrl.u32 %v1702, 7
        %v1704 = vsub.s32 %v1701, %v1703
        %v1705 = vrot.slane %v1695, %v1704
        %v1707 = vunpack.c.l.s4 1985246804
        %v1708 = vunpack.c.0.s8 %v1707
        %v1709 = vlaneseq
        %v1710 = vshrl.u32 %v1709, 7
        %v1711 = vsub.s32 %v1708, %v1710
        %v1712 = vrot.slane %v1695, %v1711
        %v1714 = vunpack.c.l.s4 839922192
        %v1715 = vunpack.c.0.s8 %v1714
        %v1716 = vlaneseq
        %v1717 = vshrl.u32 %v1716, 7
        %v1718 = vsub.s32 %v1715, %v1717
        %v1719 = vrot.slane %v1698, %v1718
        %v1721 = vunpack.c.l.s4 1985246804
        %v1722 = vunpack.c.0.s8 %v1721
        %v1723 = vlaneseq
        %v1724 = vshrl.u32 %v1723, 7
        %v1725 = vsub.s32 %v1722, %v1724
        %v1726 = vrot.slane %v1698, %v1725
        %v1727 = vrot.slane %v1705, 5
        %v1728 = vrot.slane %v1705, 6
        %v1729 = vrot.slane %v1705, 7
        %v1730 = vrot.slane %v1712, 5
        %v1731 = vrot.slane %v1712, 6
        %v1732 = vrot.slane %v1712, 7
        %v1733 = vrot.slane %v1719, 5
        %v1734 = vrot.slane %v1719, 6
        %v1735 = vrot.slane %v1719, 7
        %v1736 = vrot.slane %v1726, 5
        %v1737 = vrot.slane %v1726, 6
        %v1738 = vrot.slane %v1726, 7
        %v1755 = vmul.f32 %v1419, %v1727
        %v1756 = vmul.f32 %v1420, %v1728
        %v1757 = vmul.f32 %v1421, %v1729
        %v1758 = vmul.f32 %v1422, %v1705
        %v1759 = vmul.f32 %v1423, %v1730
        %v1760 = vmul.f32 %v1424, %v1731
        %v1761 = vmul.f32 %v1425, %v1732
        %v1762 = vmul.f32 %v1426, %v1712
        %v1763 = vmul.f32 %v1427, %v1733
        %v1764 = vmul.f32 %v1428, %v1734
        %v1765 = vmul.f32 %v1429, %v1735
        %v1766 = vmul.f32 %v1430, %v1719
        %v1767 = vmul.f32 %v1431, %v1736
        %v1768 = vmul.f32 %v1432, %v1737
        %v1769 = vmul.f32 %v1433, %v1738
        %v1770 = vmul.f32 %v1434, %v1726
        %v1787 = vlaneseq
        %v1788 = vshrl.u32 %v1787, 7
        %v1789 = vsub.s32 3, %v1788
        %v1790 = vrot.slane %v1755, %v1789
        %v1791 = vlaneseq
        %v1792 = vshrl.u32 %v1791, 7
        %v1793 = vsub.s32 7, %v1792
        %v1794 = vrot.slane %v1755, %v1793
        %v1795 = vlaneseq
        %v1796 = vshrl.u32 %v1795, 7
        %v1797 = vsub.s32 3, %v1796
        %v1798 = vrot.slane %v1756, %v1797
        %v1799 = vlaneseq
        %v1800 = vshrl.u32 %v1799, 7
        %v1801 = vsub.s32 7, %v1800
        %v1802 = vrot.slane %v1756, %v1801
        %v1803 = vlaneseq
        %v1804 = vshrl.u32 %v1803, 7
        %v1805 = vsub.s32 3, %v1804
        %v1806 = vrot.slane %v1757, %v1805
        %v1807 = vlaneseq
        %v1808 = vshrl.u32 %v1807, 7
        %v1809 = vsub.s32 7, %v1808
        %v1810 = vrot.slane %v1757, %v1809
        %v1811 = vlaneseq
        %v1812 = vshrl.u32 %v1811, 7
        %v1813 = vsub.s32 3, %v1812
        %v1814 = vrot.slane %v1758, %v1813
        %v1815 = vlaneseq
        %v1816 = vshrl.u32 %v1815, 7
        %v1817 = vsub.s32 7, %v1816
        %v1818 = vrot.slane %v1758, %v1817
        %v1819 = vlaneseq
        %v1820 = vshrl.u32 %v1819, 7
        %v1821 = vsub.s32 3, %v1820
        %v1822 = vrot.slane %v1759, %v1821
        %v1823 = vlaneseq
        %v1824 = vshrl.u32 %v1823, 7
        %v1825 = vsub.s32 7, %v1824
        %v1826 = vrot.slane %v1759, %v1825
        %v1827 = vlaneseq
        %v1828 = vshrl.u32 %v1827, 7
        %v1829 = vsub.s32 3, %v1828
        %v1830 = vrot.slane %v1760, %v1829
        %v1831 = vlaneseq
        %v1832 = vshrl.u32 %v1831, 7
        %v1833 = vsub.s32 7, %v1832
        %v1834 = vrot.slane %v1760, %v1833
        %v1835 = vlaneseq
        %v1836 = vshrl.u32 %v1835, 7
        %v1837 = vsub.s32 3, %v1836
        %v1838 = vrot.slane %v1761, %v1837
        %v1839 = vlaneseq
        %v1840 = vshrl.u32 %v1839, 7
        %v1841 = vsub.s32 7, %v1840
        %v1842 = vrot.slane %v1761, %v1841
        %v1843 = vlaneseq
        %v1844 = vshrl.u32 %v1843, 7
        %v1845 = vsub.s32 3, %v1844
        %v1846 = vrot.slane %v1762, %v1845
        %v1847 = vlaneseq
        %v1848 = vshrl.u32 %v1847, 7
        %v1849 = vsub.s32 7, %v1848
        %v1850 = vrot.slane %v1762, %v1849
        %v1851 = vlaneseq
        %v1852 = vshrl.u32 %v1851, 7
        %v1853 = vsub.s32 3, %v1852
        %v1854 = vrot.slane %v1763, %v1853
        %v1855 = vlaneseq
        %v1856 = vshrl.u32 %v1855, 7
        %v1857 = vsub.s32 7, %v1856
        %v1858 = vrot.slane %v1763, %v1857
        %v1859 = vlaneseq
        %v1860 = vshrl.u32 %v1859, 7
        %v1861 = vsub.s32 3, %v1860
        %v1862 = vrot.slane %v1764, %v1861
        %v1863 = vlaneseq
        %v1864 = vshrl.u32 %v1863, 7
        %v1865 = vsub.s32 7, %v1864
        %v1866 = vrot.slane %v1764, %v1865
        %v1867 = vlaneseq
        %v1868 = vshrl.u32 %v1867, 7
        %v1869 = vsub.s32 3, %v1868
        %v1870 = vrot.slane %v1765, %v1869
        %v1871 = vlaneseq
        %v1872 = vshrl.u32 %v1871, 7
        %v1873 = vsub.s32 7, %v1872
        %v1874 = vrot.slane %v1765, %v1873
        %v1875 = vlaneseq
        %v1876 = vshrl.u32 %v1875, 7
        %v1877 = vsub.s32 3, %v1876
        %v1878 = vrot.slane %v1766, %v1877
        %v1879 = vlaneseq
        %v1880 = vshrl.u32 %v1879, 7
        %v1881 = vsub.s32 7, %v1880
        %v1882 = vrot.slane %v1766, %v1881
        %v1883 = vlaneseq
        %v1884 = vshrl.u32 %v1883, 7
        %v1885 = vsub.s32 3, %v1884
        %v1886 = vrot.slane %v1767, %v1885
        %v1887 = vlaneseq
        %v1888 = vshrl.u32 %v1887, 7
        %v1889 = vsub.s32 7, %v1888
        %v1890 = vrot.slane %v1767, %v1889
        %v1891 = vlaneseq
        %v1892 = vshrl.u32 %v1891, 7
        %v1893 = vsub.s32 3, %v1892
        %v1894 = vrot.slane %v1768, %v1893
        %v1895 = vlaneseq
        %v1896 = vshrl.u32 %v1895, 7
        %v1897 = vsub.s32 7, %v1896
        %v1898 = vrot.slane %v1768, %v1897
        %v1899 = vlaneseq
        %v1900 = vshrl.u32 %v1899, 7
        %v1901 = vsub.s32 3, %v1900
        %v1902 = vrot.slane %v1769, %v1901
        %v1903 = vlaneseq
        %v1904 = vshrl.u32 %v1903, 7
        %v1905 = vsub.s32 7, %v1904
        %v1906 = vrot.slane %v1769, %v1905
        %v1907 = vlaneseq
        %v1908 = vshrl.u32 %v1907, 7
        %v1909 = vsub.s32 3, %v1908
        %v1910 = vrot.slane %v1770, %v1909
        %v1911 = vlaneseq
        %v1912 = vshrl.u32 %v1911, 7
        %v1913 = vsub.s32 7, %v1912
        %v1914 = vrot.slane %v1770, %v1913
        %v1915 = vsel %vm828, %v1798, %v1790
        %v1916 = vsel %vm830, %v1806, %v1915
        %v1917 = vsel %vm832, %v1814, %v1916
        %v1918 = vsel %vm834, %v1822, %v1917
        %v1919 = vsel %vm836, %v1830, %v1918
        %v1920 = vsel %vm838, %v1838, %v1919
        %v1921 = vsel %vm840, %v1846, %v1920
        %v1922 = vsel %vm828, %v1802, %v1794
        %v1923 = vsel %vm830, %v1810, %v1922
        %v1924 = vsel %vm832, %v1818, %v1923
        %v1925 = vsel %vm834, %v1826, %v1924
        %v1926 = vsel %vm836, %v1834, %v1925
        %v1927 = vsel %vm838, %v1842, %v1926
        %v1928 = vsel %vm840, %v1850, %v1927
        %v1929 = vsel %vm828, %v1862, %v1854
        %v1930 = vsel %vm830, %v1870, %v1929
        %v1931 = vsel %vm832, %v1878, %v1930
        %v1932 = vsel %vm834, %v1886, %v1931
        %v1933 = vsel %vm836, %v1894, %v1932
        %v1934 = vsel %vm838, %v1902, %v1933
        %v1935 = vsel %vm840, %v1910, %v1934
        %v1936 = vsel %vm828, %v1866, %v1858
        %v1937 = vsel %vm830, %v1874, %v1936
        %v1938 = vsel %vm832, %v1882, %v1937
        %v1939 = vsel %vm834, %v1890, %v1938
        %v1940 = vsel %vm836, %v1898, %v1939
        %v1941 = vsel %vm838, %v1906, %v1940
        %v1942 = vsel %vm840, %v1914, %v1941
        %v1947 = vadd.f32 %v1689, %v1921
        %v1948 = vadd.f32 %v1690, %v1928
        %v1949 = vadd.f32 %v1691, %v1935
        %v1950 = vadd.f32 %v1692, %v1942
        %1951 = vrot.lane.b32.xlu0 %v434, 1
        %v1952 = vpop.permute.xlu0 %1951
        %1953 = vrot.lane.b32.xlu0 %v436, 1
        %v1954 = vpop.permute.xlu0 %1953
        %1955 = vrot.lane.b32.xlu0 %v435, 1
        %v1956 = vpop.permute.xlu0 %1955
        %1957 = vrot.lane.b32.xlu0 %v437, 1
        %v1958 = vpop.permute.xlu0 %1957
        %v1959 = vsel %vm1313, %v1952, %v1956
        %v1960 = vsel %vm1313, %v1954, %v1958
        %v1961 = vsel %vm1313, %v1956, %v1952
        %v1962 = vsel %vm1313, %v1958, %v1954
        %v1967 = vcombine.low %v1961, %v1959
        %v1968 = vcombine.high %v1961, %v1959
        %v1969 = vcombine.low %v1962, %v1960
        %v1970 = vcombine.high %v1962, %v1960
        %v1971 = vrot.slane %v1967, 6
        %v1972 = vrot.slane %v1967, 7
        %v1973 = vrot.slane %v1967, 1
        %v1974 = vrot.slane %v1968, 6
        %v1975 = vrot.slane %v1968, 7
        %v1976 = vrot.slane %v1968, 1
        %v1977 = vrot.slane %v1969, 6
        %v1978 = vrot.slane %v1969, 7
        %v1979 = vrot.slane %v1969, 1
        %v1980 = vrot.slane %v1970, 6
        %v1981 = vrot.slane %v1970, 7
        %v1982 = vrot.slane %v1970, 1
        %v1999 = vsel %vm458, %v1971, 0.0
        %v2000 = vsel %vm458, %v1972, 0.0
        %v2001 = vsel %vm458, %v1967, 0.0
        %v2002 = vsel %vm458, %v1973, 0.0
        %v2003 = vsel %vm458, %v1974, 0.0
        %v2004 = vsel %vm458, %v1975, 0.0
        %v2005 = vsel %vm458, %v1968, 0.0
        %v2006 = vsel %vm458, %v1976, 0.0
        %v2007 = vsel %vm458, %v1977, 0.0
        %v2008 = vsel %vm458, %v1978, 0.0
        %v2009 = vsel %vm458, %v1969, 0.0
        %v2010 = vsel %vm458, %v1979, 0.0
        %v2011 = vsel %vm458, %v1980, 0.0
        %v2012 = vsel %vm458, %v1981, 0.0
        %v2013 = vsel %vm458, %v1970, 0.0
        %v2014 = vsel %vm458, %v1982, 0.0
        %2015 = vrot.lane.b32.xlu0 %v434, 127
        %v2016 = vpop.permute.xlu0 %2015
        %2017 = vrot.lane.b32.xlu0 %v436, 127
        %v2018 = vpop.permute.xlu0 %2017
        %2019 = vrot.lane.b32.xlu0 %v435, 127
        %v2020 = vpop.permute.xlu0 %2019
        %2021 = vrot.lane.b32.xlu0 %v437, 127
        %v2022 = vpop.permute.xlu0 %2021
        %v2023 = vsel %vm1378, %v2016, %v2020
        %v2024 = vsel %vm1378, %v2018, %v2022
        %v2025 = vsel %vm1378, %v2020, %v2016
        %v2026 = vsel %vm1378, %v2022, %v2018
        %v2031 = vcombine.low %v2023, %v2025
        %v2032 = vcombine.high %v2023, %v2025
        %v2033 = vcombine.low %v2024, %v2026
        %v2034 = vcombine.high %v2024, %v2026
        %v2035 = vrot.slane %v2031, 5
        %v2036 = vrot.slane %v2031, 6
        %v2037 = vrot.slane %v2031, 7
        %v2038 = vrot.slane %v2032, 5
        %v2039 = vrot.slane %v2032, 6
        %v2040 = vrot.slane %v2032, 7
        %v2041 = vrot.slane %v2033, 5
        %v2042 = vrot.slane %v2033, 6
        %v2043 = vrot.slane %v2033, 7
        %v2044 = vrot.slane %v2034, 5
        %v2045 = vrot.slane %v2034, 6
        %v2046 = vrot.slane %v2034, 7
        %v2063 = vsel %vm458, %v2035, 0.0
        %v2064 = vsel %vm458, %v2036, 0.0
        %v2065 = vsel %vm458, %v2037, 0.0
        %v2066 = vsel %vm458, %v2031, 0.0
        %v2067 = vsel %vm458, %v2038, 0.0
        %v2068 = vsel %vm458, %v2039, 0.0
        %v2069 = vsel %vm458, %v2040, 0.0
        %v2070 = vsel %vm458, %v2032, 0.0
        %v2071 = vsel %vm458, %v2041, 0.0
        %v2072 = vsel %vm458, %v2042, 0.0
        %v2073 = vsel %vm458, %v2043, 0.0
        %v2074 = vsel %vm458, %v2033, 0.0
        %v2075 = vsel %vm458, %v2044, 0.0
        %v2076 = vsel %vm458, %v2045, 0.0
        %v2077 = vsel %vm458, %v2046, 0.0
        %v2078 = vsel %vm458, %v2034, 0.0
        %2079 = vset.pattern.permute.xlu0 3
        %2080 = vperm.xlu0 %2079, %v440
        %v2081 = vpop.permute.xlu0 %2080
        %2082 = vset.pattern.permute.xlu0 3
        %2083 = vperm.xlu0 %2082, %v441
        %v2084 = vpop.permute.xlu0 %2083
        %v2086 = vunpack.c.l.s4 839922192
        %v2087 = vunpack.c.0.s8 %v2086
        %v2088 = vlaneseq
        %v2089 = vshrl.u32 %v2088, 7
        %v2090 = vsub.s32 %v2087, %v2089
        %v2091 = vrot.slane %v2081, %v2090
        %v2093 = vunpack.c.l.s4 1985246804
        %v2094 = vunpack.c.0.s8 %v2093
        %v2095 = vlaneseq
        %v2096 = vshrl.u32 %v2095, 7
        %v2097 = vsub.s32 %v2094, %v2096
        %v2098 = vrot.slane %v2081, %v2097
        %v2100 = vunpack.c.l.s4 839922192
        %v2101 = vunpack.c.0.s8 %v2100
        %v2102 = vlaneseq
        %v2103 = vshrl.u32 %v2102, 7
        %v2104 = vsub.s32 %v2101, %v2103
        %v2105 = vrot.slane %v2084, %v2104
        %v2107 = vunpack.c.l.s4 1985246804
        %v2108 = vunpack.c.0.s8 %v2107
        %v2109 = vlaneseq
        %v2110 = vshrl.u32 %v2109, 7
        %v2111 = vsub.s32 %v2108, %v2110
        %v2112 = vrot.slane %v2084, %v2111
        %v2113 = vrot.slane %v2091, 6
        %v2114 = vrot.slane %v2091, 7
        %v2115 = vrot.slane %v2091, 1
        %v2116 = vrot.slane %v2098, 6
        %v2117 = vrot.slane %v2098, 7
        %v2118 = vrot.slane %v2098, 1
        %v2119 = vrot.slane %v2105, 6
        %v2120 = vrot.slane %v2105, 7
        %v2121 = vrot.slane %v2105, 1
        %v2122 = vrot.slane %v2112, 6
        %v2123 = vrot.slane %v2112, 7
        %v2124 = vrot.slane %v2112, 1
        %v2141 = vmul.f32 %v1999, %v2113
        %v2142 = vmul.f32 %v2000, %v2114
        %v2143 = vmul.f32 %v2001, %v2091
        %v2144 = vmul.f32 %v2002, %v2115
        %v2145 = vmul.f32 %v2003, %v2116
        %v2146 = vmul.f32 %v2004, %v2117
        %v2147 = vmul.f32 %v2005, %v2098
        %v2148 = vmul.f32 %v2006, %v2118
        %v2149 = vmul.f32 %v2007, %v2119
        %v2150 = vmul.f32 %v2008, %v2120
        %v2151 = vmul.f32 %v2009, %v2105
        %v2152 = vmul.f32 %v2010, %v2121
        %v2153 = vmul.f32 %v2011, %v2122
        %v2154 = vmul.f32 %v2012, %v2123
        %v2155 = vmul.f32 %v2013, %v2112
        %v2156 = vmul.f32 %v2014, %v2124
        %v2173 = vlaneseq
        %v2174 = vshrl.u32 %v2173, 7
        %v2175 = vsub.s32 2, %v2174
        %v2176 = vrot.slane %v2141, %v2175
        %v2177 = vlaneseq
        %v2178 = vshrl.u32 %v2177, 7
        %v2179 = vsub.s32 6, %v2178
        %v2180 = vrot.slane %v2141, %v2179
        %v2181 = vlaneseq
        %v2182 = vshrl.u32 %v2181, 7
        %v2183 = vsub.s32 2, %v2182
        %v2184 = vrot.slane %v2142, %v2183
        %v2185 = vlaneseq
        %v2186 = vshrl.u32 %v2185, 7
        %v2187 = vsub.s32 6, %v2186
        %v2188 = vrot.slane %v2142, %v2187
        %v2189 = vlaneseq
        %v2190 = vshrl.u32 %v2189, 7
        %v2191 = vsub.s32 2, %v2190
        %v2192 = vrot.slane %v2143, %v2191
        %v2193 = vlaneseq
        %v2194 = vshrl.u32 %v2193, 7
        %v2195 = vsub.s32 6, %v2194
        %v2196 = vrot.slane %v2143, %v2195
        %v2197 = vlaneseq
        %v2198 = vshrl.u32 %v2197, 7
        %v2199 = vsub.s32 2, %v2198
        %v2200 = vrot.slane %v2144, %v2199
        %v2201 = vlaneseq
        %v2202 = vshrl.u32 %v2201, 7
        %v2203 = vsub.s32 6, %v2202
        %v2204 = vrot.slane %v2144, %v2203
        %v2205 = vlaneseq
        %v2206 = vshrl.u32 %v2205, 7
        %v2207 = vsub.s32 2, %v2206
        %v2208 = vrot.slane %v2145, %v2207
        %v2209 = vlaneseq
        %v2210 = vshrl.u32 %v2209, 7
        %v2211 = vsub.s32 6, %v2210
        %v2212 = vrot.slane %v2145, %v2211
        %v2213 = vlaneseq
        %v2214 = vshrl.u32 %v2213, 7
        %v2215 = vsub.s32 2, %v2214
        %v2216 = vrot.slane %v2146, %v2215
        %v2217 = vlaneseq
        %v2218 = vshrl.u32 %v2217, 7
        %v2219 = vsub.s32 6, %v2218
        %v2220 = vrot.slane %v2146, %v2219
        %v2221 = vlaneseq
        %v2222 = vshrl.u32 %v2221, 7
        %v2223 = vsub.s32 2, %v2222
        %v2224 = vrot.slane %v2147, %v2223
        %v2225 = vlaneseq
        %v2226 = vshrl.u32 %v2225, 7
        %v2227 = vsub.s32 6, %v2226
        %v2228 = vrot.slane %v2147, %v2227
        %v2229 = vlaneseq
        %v2230 = vshrl.u32 %v2229, 7
        %v2231 = vsub.s32 2, %v2230
        %v2232 = vrot.slane %v2148, %v2231
        %v2233 = vlaneseq
        %v2234 = vshrl.u32 %v2233, 7
        %v2235 = vsub.s32 6, %v2234
        %v2236 = vrot.slane %v2148, %v2235
        %v2237 = vlaneseq
        %v2238 = vshrl.u32 %v2237, 7
        %v2239 = vsub.s32 2, %v2238
        %v2240 = vrot.slane %v2149, %v2239
        %v2241 = vlaneseq
        %v2242 = vshrl.u32 %v2241, 7
        %v2243 = vsub.s32 6, %v2242
        %v2244 = vrot.slane %v2149, %v2243
        %v2245 = vlaneseq
        %v2246 = vshrl.u32 %v2245, 7
        %v2247 = vsub.s32 2, %v2246
        %v2248 = vrot.slane %v2150, %v2247
        %v2249 = vlaneseq
        %v2250 = vshrl.u32 %v2249, 7
        %v2251 = vsub.s32 6, %v2250
        %v2252 = vrot.slane %v2150, %v2251
        %v2253 = vlaneseq
        %v2254 = vshrl.u32 %v2253, 7
        %v2255 = vsub.s32 2, %v2254
        %v2256 = vrot.slane %v2151, %v2255
        %v2257 = vlaneseq
        %v2258 = vshrl.u32 %v2257, 7
        %v2259 = vsub.s32 6, %v2258
        %v2260 = vrot.slane %v2151, %v2259
        %v2261 = vlaneseq
        %v2262 = vshrl.u32 %v2261, 7
        %v2263 = vsub.s32 2, %v2262
        %v2264 = vrot.slane %v2152, %v2263
        %v2265 = vlaneseq
        %v2266 = vshrl.u32 %v2265, 7
        %v2267 = vsub.s32 6, %v2266
        %v2268 = vrot.slane %v2152, %v2267
        %v2269 = vlaneseq
        %v2270 = vshrl.u32 %v2269, 7
        %v2271 = vsub.s32 2, %v2270
        %v2272 = vrot.slane %v2153, %v2271
        %v2273 = vlaneseq
        %v2274 = vshrl.u32 %v2273, 7
        %v2275 = vsub.s32 6, %v2274
        %v2276 = vrot.slane %v2153, %v2275
        %v2277 = vlaneseq
        %v2278 = vshrl.u32 %v2277, 7
        %v2279 = vsub.s32 2, %v2278
        %v2280 = vrot.slane %v2154, %v2279
        %v2281 = vlaneseq
        %v2282 = vshrl.u32 %v2281, 7
        %v2283 = vsub.s32 6, %v2282
        %v2284 = vrot.slane %v2154, %v2283
        %v2285 = vlaneseq
        %v2286 = vshrl.u32 %v2285, 7
        %v2287 = vsub.s32 2, %v2286
        %v2288 = vrot.slane %v2155, %v2287
        %v2289 = vlaneseq
        %v2290 = vshrl.u32 %v2289, 7
        %v2291 = vsub.s32 6, %v2290
        %v2292 = vrot.slane %v2155, %v2291
        %v2293 = vlaneseq
        %v2294 = vshrl.u32 %v2293, 7
        %v2295 = vsub.s32 2, %v2294
        %v2296 = vrot.slane %v2156, %v2295
        %v2297 = vlaneseq
        %v2298 = vshrl.u32 %v2297, 7
        %v2299 = vsub.s32 6, %v2298
        %v2300 = vrot.slane %v2156, %v2299
        %v2301 = vsel %vm828, %v2184, %v2176
        %v2302 = vsel %vm830, %v2192, %v2301
        %v2303 = vsel %vm832, %v2200, %v2302
        %v2304 = vsel %vm834, %v2208, %v2303
        %v2305 = vsel %vm836, %v2216, %v2304
        %v2306 = vsel %vm838, %v2224, %v2305
        %v2307 = vsel %vm840, %v2232, %v2306
        %v2308 = vsel %vm828, %v2188, %v2180
        %v2309 = vsel %vm830, %v2196, %v2308
        %v2310 = vsel %vm832, %v2204, %v2309
        %v2311 = vsel %vm834, %v2212, %v2310
        %v2312 = vsel %vm836, %v2220, %v2311
        %v2313 = vsel %vm838, %v2228, %v2312
        %v2314 = vsel %vm840, %v2236, %v2313
        %v2315 = vsel %vm828, %v2248, %v2240
        %v2316 = vsel %vm830, %v2256, %v2315
        %v2317 = vsel %vm832, %v2264, %v2316
        %v2318 = vsel %vm834, %v2272, %v2317
        %v2319 = vsel %vm836, %v2280, %v2318
        %v2320 = vsel %vm838, %v2288, %v2319
        %v2321 = vsel %vm840, %v2296, %v2320
        %v2322 = vsel %vm828, %v2252, %v2244
        %v2323 = vsel %vm830, %v2260, %v2322
        %v2324 = vsel %vm832, %v2268, %v2323
        %v2325 = vsel %vm834, %v2276, %v2324
        %v2326 = vsel %vm836, %v2284, %v2325
        %v2327 = vsel %vm838, %v2292, %v2326
        %v2328 = vsel %vm840, %v2300, %v2327
        %v2333 = vadd.f32 %v1947, %v2307
        %v2334 = vadd.f32 %v1948, %v2314
        %v2335 = vadd.f32 %v1949, %v2321
        %v2336 = vadd.f32 %v1950, %v2328
        %2337 = vset.pattern.permute.xlu0 5
        %2338 = vperm.xlu0 %2337, %v440
        %v2339 = vpop.permute.xlu0 %2338
        %2340 = vset.pattern.permute.xlu0 5
        %2341 = vperm.xlu0 %2340, %v441
        %v2342 = vpop.permute.xlu0 %2341
        %v2344 = vunpack.c.l.s4 839922192
        %v2345 = vunpack.c.0.s8 %v2344
        %v2346 = vlaneseq
        %v2347 = vshrl.u32 %v2346, 7
        %v2348 = vsub.s32 %v2345, %v2347
        %v2349 = vrot.slane %v2339, %v2348
        %v2351 = vunpack.c.l.s4 1985246804
        %v2352 = vunpack.c.0.s8 %v2351
        %v2353 = vlaneseq
        %v2354 = vshrl.u32 %v2353, 7
        %v2355 = vsub.s32 %v2352, %v2354
        %v2356 = vrot.slane %v2339, %v2355
        %v2358 = vunpack.c.l.s4 839922192
        %v2359 = vunpack.c.0.s8 %v2358
        %v2360 = vlaneseq
        %v2361 = vshrl.u32 %v2360, 7
        %v2362 = vsub.s32 %v2359, %v2361
        %v2363 = vrot.slane %v2342, %v2362
        %v2365 = vunpack.c.l.s4 1985246804
        %v2366 = vunpack.c.0.s8 %v2365
        %v2367 = vlaneseq
        %v2368 = vshrl.u32 %v2367, 7
        %v2369 = vsub.s32 %v2366, %v2368
        %v2370 = vrot.slane %v2342, %v2369
        %v2371 = vrot.slane %v2349, 5
        %v2372 = vrot.slane %v2349, 6
        %v2373 = vrot.slane %v2349, 7
        %v2374 = vrot.slane %v2356, 5
        %v2375 = vrot.slane %v2356, 6
        %v2376 = vrot.slane %v2356, 7
        %v2377 = vrot.slane %v2363, 5
        %v2378 = vrot.slane %v2363, 6
        %v2379 = vrot.slane %v2363, 7
        %v2380 = vrot.slane %v2370, 5
        %v2381 = vrot.slane %v2370, 6
        %v2382 = vrot.slane %v2370, 7
        %v2399 = vmul.f32 %v2063, %v2371
        %v2400 = vmul.f32 %v2064, %v2372
        %v2401 = vmul.f32 %v2065, %v2373
        %v2402 = vmul.f32 %v2066, %v2349
        %v2403 = vmul.f32 %v2067, %v2374
        %v2404 = vmul.f32 %v2068, %v2375
        %v2405 = vmul.f32 %v2069, %v2376
        %v2406 = vmul.f32 %v2070, %v2356
        %v2407 = vmul.f32 %v2071, %v2377
        %v2408 = vmul.f32 %v2072, %v2378
        %v2409 = vmul.f32 %v2073, %v2379
        %v2410 = vmul.f32 %v2074, %v2363
        %v2411 = vmul.f32 %v2075, %v2380
        %v2412 = vmul.f32 %v2076, %v2381
        %v2413 = vmul.f32 %v2077, %v2382
        %v2414 = vmul.f32 %v2078, %v2370
        %v2431 = vlaneseq
        %v2432 = vshrl.u32 %v2431, 7
        %v2433 = vsub.s32 3, %v2432
        %v2434 = vrot.slane %v2399, %v2433
        %v2435 = vlaneseq
        %v2436 = vshrl.u32 %v2435, 7
        %v2437 = vsub.s32 7, %v2436
        %v2438 = vrot.slane %v2399, %v2437
        %v2439 = vlaneseq
        %v2440 = vshrl.u32 %v2439, 7
        %v2441 = vsub.s32 3, %v2440
        %v2442 = vrot.slane %v2400, %v2441
        %v2443 = vlaneseq
        %v2444 = vshrl.u32 %v2443, 7
        %v2445 = vsub.s32 7, %v2444
        %v2446 = vrot.slane %v2400, %v2445
        %v2447 = vlaneseq
        %v2448 = vshrl.u32 %v2447, 7
        %v2449 = vsub.s32 3, %v2448
        %v2450 = vrot.slane %v2401, %v2449
        %v2451 = vlaneseq
        %v2452 = vshrl.u32 %v2451, 7
        %v2453 = vsub.s32 7, %v2452
        %v2454 = vrot.slane %v2401, %v2453
        %v2455 = vlaneseq
        %v2456 = vshrl.u32 %v2455, 7
        %v2457 = vsub.s32 3, %v2456
        %v2458 = vrot.slane %v2402, %v2457
        %v2459 = vlaneseq
        %v2460 = vshrl.u32 %v2459, 7
        %v2461 = vsub.s32 7, %v2460
        %v2462 = vrot.slane %v2402, %v2461
        %v2463 = vlaneseq
        %v2464 = vshrl.u32 %v2463, 7
        %v2465 = vsub.s32 3, %v2464
        %v2466 = vrot.slane %v2403, %v2465
        %v2467 = vlaneseq
        %v2468 = vshrl.u32 %v2467, 7
        %v2469 = vsub.s32 7, %v2468
        %v2470 = vrot.slane %v2403, %v2469
        %v2471 = vlaneseq
        %v2472 = vshrl.u32 %v2471, 7
        %v2473 = vsub.s32 3, %v2472
        %v2474 = vrot.slane %v2404, %v2473
        %v2475 = vlaneseq
        %v2476 = vshrl.u32 %v2475, 7
        %v2477 = vsub.s32 7, %v2476
        %v2478 = vrot.slane %v2404, %v2477
        %v2479 = vlaneseq
        %v2480 = vshrl.u32 %v2479, 7
        %v2481 = vsub.s32 3, %v2480
        %v2482 = vrot.slane %v2405, %v2481
        %v2483 = vlaneseq
        %v2484 = vshrl.u32 %v2483, 7
        %v2485 = vsub.s32 7, %v2484
        %v2486 = vrot.slane %v2405, %v2485
        %v2487 = vlaneseq
        %v2488 = vshrl.u32 %v2487, 7
        %v2489 = vsub.s32 3, %v2488
        %v2490 = vrot.slane %v2406, %v2489
        %v2491 = vlaneseq
        %v2492 = vshrl.u32 %v2491, 7
        %v2493 = vsub.s32 7, %v2492
        %v2494 = vrot.slane %v2406, %v2493
        %v2495 = vlaneseq
        %v2496 = vshrl.u32 %v2495, 7
        %v2497 = vsub.s32 3, %v2496
        %v2498 = vrot.slane %v2407, %v2497
        %v2499 = vlaneseq
        %v2500 = vshrl.u32 %v2499, 7
        %v2501 = vsub.s32 7, %v2500
        %v2502 = vrot.slane %v2407, %v2501
        %v2503 = vlaneseq
        %v2504 = vshrl.u32 %v2503, 7
        %v2505 = vsub.s32 3, %v2504
        %v2506 = vrot.slane %v2408, %v2505
        %v2507 = vlaneseq
        %v2508 = vshrl.u32 %v2507, 7
        %v2509 = vsub.s32 7, %v2508
        %v2510 = vrot.slane %v2408, %v2509
        %v2511 = vlaneseq
        %v2512 = vshrl.u32 %v2511, 7
        %v2513 = vsub.s32 3, %v2512
        %v2514 = vrot.slane %v2409, %v2513
        %v2515 = vlaneseq
        %v2516 = vshrl.u32 %v2515, 7
        %v2517 = vsub.s32 7, %v2516
        %v2518 = vrot.slane %v2409, %v2517
        %v2519 = vlaneseq
        %v2520 = vshrl.u32 %v2519, 7
        %v2521 = vsub.s32 3, %v2520
        %v2522 = vrot.slane %v2410, %v2521
        %v2523 = vlaneseq
        %v2524 = vshrl.u32 %v2523, 7
        %v2525 = vsub.s32 7, %v2524
        %v2526 = vrot.slane %v2410, %v2525
        %v2527 = vlaneseq
        %v2528 = vshrl.u32 %v2527, 7
        %v2529 = vsub.s32 3, %v2528
        %v2530 = vrot.slane %v2411, %v2529
        %v2531 = vlaneseq
        %v2532 = vshrl.u32 %v2531, 7
        %v2533 = vsub.s32 7, %v2532
        %v2534 = vrot.slane %v2411, %v2533
        %v2535 = vlaneseq
        %v2536 = vshrl.u32 %v2535, 7
        %v2537 = vsub.s32 3, %v2536
        %v2538 = vrot.slane %v2412, %v2537
        %v2539 = vlaneseq
        %v2540 = vshrl.u32 %v2539, 7
        %v2541 = vsub.s32 7, %v2540
        %v2542 = vrot.slane %v2412, %v2541
        %v2543 = vlaneseq
        %v2544 = vshrl.u32 %v2543, 7
        %v2545 = vsub.s32 3, %v2544
        %v2546 = vrot.slane %v2413, %v2545
        %v2547 = vlaneseq
        %v2548 = vshrl.u32 %v2547, 7
        %v2549 = vsub.s32 7, %v2548
        %v2550 = vrot.slane %v2413, %v2549
        %v2551 = vlaneseq
        %v2552 = vshrl.u32 %v2551, 7
        %v2553 = vsub.s32 3, %v2552
        %v2554 = vrot.slane %v2414, %v2553
        %v2555 = vlaneseq
        %v2556 = vshrl.u32 %v2555, 7
        %v2557 = vsub.s32 7, %v2556
        %v2558 = vrot.slane %v2414, %v2557
        %v2559 = vsel %vm828, %v2442, %v2434
        %v2560 = vsel %vm830, %v2450, %v2559
        %v2561 = vsel %vm832, %v2458, %v2560
        %v2562 = vsel %vm834, %v2466, %v2561
        %v2563 = vsel %vm836, %v2474, %v2562
        %v2564 = vsel %vm838, %v2482, %v2563
        %v2565 = vsel %vm840, %v2490, %v2564
        %v2566 = vsel %vm828, %v2446, %v2438
        %v2567 = vsel %vm830, %v2454, %v2566
        %v2568 = vsel %vm832, %v2462, %v2567
        %v2569 = vsel %vm834, %v2470, %v2568
        %v2570 = vsel %vm836, %v2478, %v2569
        %v2571 = vsel %vm838, %v2486, %v2570
        %v2572 = vsel %vm840, %v2494, %v2571
        %v2573 = vsel %vm828, %v2506, %v2498
        %v2574 = vsel %vm830, %v2514, %v2573
        %v2575 = vsel %vm832, %v2522, %v2574
        %v2576 = vsel %vm834, %v2530, %v2575
        %v2577 = vsel %vm836, %v2538, %v2576
        %v2578 = vsel %vm838, %v2546, %v2577
        %v2579 = vsel %vm840, %v2554, %v2578
        %v2580 = vsel %vm828, %v2510, %v2502
        %v2581 = vsel %vm830, %v2518, %v2580
        %v2582 = vsel %vm832, %v2526, %v2581
        %v2583 = vsel %vm834, %v2534, %v2582
        %v2584 = vsel %vm836, %v2542, %v2583
        %v2585 = vsel %vm838, %v2550, %v2584
        %v2586 = vsel %vm840, %v2558, %v2585
        %v2591 = vadd.f32 %v2333, %v2565
        %v2592 = vadd.f32 %v2334, %v2572
        %v2593 = vadd.f32 %v2335, %v2579
        %v2594 = vadd.f32 %v2336, %v2586
        %v2611 = vlaneseq
        %v2612 = vshrl.u32 %v2611, 7
        %v2613 = vsub.s32 1, %v2612
        %v2614 = vrot.slane %v560, %v2613
        %v2615 = vlaneseq
        %v2616 = vshrl.u32 %v2615, 7
        %v2617 = vsub.s32 5, %v2616
        %v2618 = vrot.slane %v560, %v2617
        %v2619 = vlaneseq
        %v2620 = vshrl.u32 %v2619, 7
        %v2621 = vsub.s32 1, %v2620
        %v2622 = vrot.slane %v561, %v2621
        %v2623 = vlaneseq
        %v2624 = vshrl.u32 %v2623, 7
        %v2625 = vsub.s32 5, %v2624
        %v2626 = vrot.slane %v561, %v2625
        %v2627 = vlaneseq
        %v2628 = vshrl.u32 %v2627, 7
        %v2629 = vsub.s32 1, %v2628
        %v2630 = vrot.slane %v562, %v2629
        %v2631 = vlaneseq
        %v2632 = vshrl.u32 %v2631, 7
        %v2633 = vsub.s32 5, %v2632
        %v2634 = vrot.slane %v562, %v2633
        %v2635 = vlaneseq
        %v2636 = vshrl.u32 %v2635, 7
        %v2637 = vsub.s32 1, %v2636
        %v2638 = vrot.slane %v563, %v2637
        %v2639 = vlaneseq
        %v2640 = vshrl.u32 %v2639, 7
        %v2641 = vsub.s32 5, %v2640
        %v2642 = vrot.slane %v563, %v2641
        %v2643 = vlaneseq
        %v2644 = vshrl.u32 %v2643, 7
        %v2645 = vsub.s32 1, %v2644
        %v2646 = vrot.slane %v564, %v2645
        %v2647 = vlaneseq
        %v2648 = vshrl.u32 %v2647, 7
        %v2649 = vsub.s32 5, %v2648
        %v2650 = vrot.slane %v564, %v2649
        %v2651 = vlaneseq
        %v2652 = vshrl.u32 %v2651, 7
        %v2653 = vsub.s32 1, %v2652
        %v2654 = vrot.slane %v565, %v2653
        %v2655 = vlaneseq
        %v2656 = vshrl.u32 %v2655, 7
        %v2657 = vsub.s32 5, %v2656
        %v2658 = vrot.slane %v565, %v2657
        %v2659 = vlaneseq
        %v2660 = vshrl.u32 %v2659, 7
        %v2661 = vsub.s32 1, %v2660
        %v2662 = vrot.slane %v566, %v2661
        %v2663 = vlaneseq
        %v2664 = vshrl.u32 %v2663, 7
        %v2665 = vsub.s32 5, %v2664
        %v2666 = vrot.slane %v566, %v2665
        %v2667 = vlaneseq
        %v2668 = vshrl.u32 %v2667, 7
        %v2669 = vsub.s32 1, %v2668
        %v2670 = vrot.slane %v567, %v2669
        %v2671 = vlaneseq
        %v2672 = vshrl.u32 %v2671, 7
        %v2673 = vsub.s32 5, %v2672
        %v2674 = vrot.slane %v567, %v2673
        %v2675 = vlaneseq
        %v2676 = vshrl.u32 %v2675, 7
        %v2677 = vsub.s32 1, %v2676
        %v2678 = vrot.slane %v568, %v2677
        %v2679 = vlaneseq
        %v2680 = vshrl.u32 %v2679, 7
        %v2681 = vsub.s32 5, %v2680
        %v2682 = vrot.slane %v568, %v2681
        %v2683 = vlaneseq
        %v2684 = vshrl.u32 %v2683, 7
        %v2685 = vsub.s32 1, %v2684
        %v2686 = vrot.slane %v569, %v2685
        %v2687 = vlaneseq
        %v2688 = vshrl.u32 %v2687, 7
        %v2689 = vsub.s32 5, %v2688
        %v2690 = vrot.slane %v569, %v2689
        %v2691 = vlaneseq
        %v2692 = vshrl.u32 %v2691, 7
        %v2693 = vsub.s32 1, %v2692
        %v2694 = vrot.slane %v570, %v2693
        %v2695 = vlaneseq
        %v2696 = vshrl.u32 %v2695, 7
        %v2697 = vsub.s32 5, %v2696
        %v2698 = vrot.slane %v570, %v2697
        %v2699 = vlaneseq
        %v2700 = vshrl.u32 %v2699, 7
        %v2701 = vsub.s32 1, %v2700
        %v2702 = vrot.slane %v571, %v2701
        %v2703 = vlaneseq
        %v2704 = vshrl.u32 %v2703, 7
        %v2705 = vsub.s32 5, %v2704
        %v2706 = vrot.slane %v571, %v2705
        %v2707 = vlaneseq
        %v2708 = vshrl.u32 %v2707, 7
        %v2709 = vsub.s32 1, %v2708
        %v2710 = vrot.slane %v572, %v2709
        %v2711 = vlaneseq
        %v2712 = vshrl.u32 %v2711, 7
        %v2713 = vsub.s32 5, %v2712
        %v2714 = vrot.slane %v572, %v2713
        %v2715 = vlaneseq
        %v2716 = vshrl.u32 %v2715, 7
        %v2717 = vsub.s32 1, %v2716
        %v2718 = vrot.slane %v573, %v2717
        %v2719 = vlaneseq
        %v2720 = vshrl.u32 %v2719, 7
        %v2721 = vsub.s32 5, %v2720
        %v2722 = vrot.slane %v573, %v2721
        %v2723 = vlaneseq
        %v2724 = vshrl.u32 %v2723, 7
        %v2725 = vsub.s32 1, %v2724
        %v2726 = vrot.slane %v574, %v2725
        %v2727 = vlaneseq
        %v2728 = vshrl.u32 %v2727, 7
        %v2729 = vsub.s32 5, %v2728
        %v2730 = vrot.slane %v574, %v2729
        %v2731 = vlaneseq
        %v2732 = vshrl.u32 %v2731, 7
        %v2733 = vsub.s32 1, %v2732
        %v2734 = vrot.slane %v575, %v2733
        %v2735 = vlaneseq
        %v2736 = vshrl.u32 %v2735, 7
        %v2737 = vsub.s32 5, %v2736
        %v2738 = vrot.slane %v575, %v2737
        %v2739 = vsel %vm828, %v2622, %v2614
        %v2740 = vsel %vm830, %v2630, %v2739
        %v2741 = vsel %vm832, %v2638, %v2740
        %v2742 = vsel %vm834, %v2646, %v2741
        %v2743 = vsel %vm836, %v2654, %v2742
        %v2744 = vsel %vm838, %v2662, %v2743
        %v2745 = vsel %vm840, %v2670, %v2744
        %v2746 = vsel %vm828, %v2626, %v2618
        %v2747 = vsel %vm830, %v2634, %v2746
        %v2748 = vsel %vm832, %v2642, %v2747
        %v2749 = vsel %vm834, %v2650, %v2748
        %v2750 = vsel %vm836, %v2658, %v2749
        %v2751 = vsel %vm838, %v2666, %v2750
        %v2752 = vsel %vm840, %v2674, %v2751
        %v2753 = vsel %vm828, %v2686, %v2678
        %v2754 = vsel %vm830, %v2694, %v2753
        %v2755 = vsel %vm832, %v2702, %v2754
        %v2756 = vsel %vm834, %v2710, %v2755
        %v2757 = vsel %vm836, %v2718, %v2756
        %v2758 = vsel %vm838, %v2726, %v2757
        %v2759 = vsel %vm840, %v2734, %v2758
        %v2760 = vsel %vm828, %v2690, %v2682
        %v2761 = vsel %vm830, %v2698, %v2760
        %v2762 = vsel %vm832, %v2706, %v2761
        %v2763 = vsel %vm834, %v2714, %v2762
        %v2764 = vsel %vm836, %v2722, %v2763
        %v2765 = vsel %vm838, %v2730, %v2764
        %v2766 = vsel %vm840, %v2738, %v2765
        %2771 = vrot.lane.b32.xlu0 %v2745, 1
        %v2772 = vpop.permute.xlu0 %2771
        %2773 = vrot.lane.b32.xlu0 %v2759, 1
        %v2774 = vpop.permute.xlu0 %2773
        %2775 = vrot.lane.b32.xlu0 %v2752, 1
        %v2776 = vpop.permute.xlu0 %2775
        %2777 = vrot.lane.b32.xlu0 %v2766, 1
        %v2778 = vpop.permute.xlu0 %2777
        %v2779 = vsel %vm1313, %v2772, %v2776
        %v2780 = vsel %vm1313, %v2774, %v2778
        %v2781 = vsel %vm1313, %v2776, %v2772
        %v2782 = vsel %vm1313, %v2778, %v2774
        %v2787 = vcombine.low %v2781, %v2779
        %v2788 = vcombine.high %v2781, %v2779
        %v2789 = vcombine.low %v2782, %v2780
        %v2790 = vcombine.high %v2782, %v2780
        %v2791 = vrot.slane %v2787, 6
        %v2792 = vrot.slane %v2787, 7
        %v2793 = vrot.slane %v2787, 1
        %v2794 = vrot.slane %v2788, 6
        %v2795 = vrot.slane %v2788, 7
        %v2796 = vrot.slane %v2788, 1
        %v2797 = vrot.slane %v2789, 6
        %v2798 = vrot.slane %v2789, 7
        %v2799 = vrot.slane %v2789, 1
        %v2800 = vrot.slane %v2790, 6
        %v2801 = vrot.slane %v2790, 7
        %v2802 = vrot.slane %v2790, 1
        %v2819 = vsel %vm458, %v2791, 0.0
        %v2820 = vsel %vm458, %v2792, 0.0
        %v2821 = vsel %vm458, %v2787, 0.0
        %v2822 = vsel %vm458, %v2793, 0.0
        %v2823 = vsel %vm458, %v2794, 0.0
        %v2824 = vsel %vm458, %v2795, 0.0
        %v2825 = vsel %vm458, %v2788, 0.0
        %v2826 = vsel %vm458, %v2796, 0.0
        %v2827 = vsel %vm458, %v2797, 0.0
        %v2828 = vsel %vm458, %v2798, 0.0
        %v2829 = vsel %vm458, %v2789, 0.0
        %v2830 = vsel %vm458, %v2799, 0.0
        %v2831 = vsel %vm458, %v2800, 0.0
        %v2832 = vsel %vm458, %v2801, 0.0
        %v2833 = vsel %vm458, %v2790, 0.0
        %v2834 = vsel %vm458, %v2802, 0.0
        %2835 = vrot.lane.b32.xlu0 %v2745, 127
        %v2836 = vpop.permute.xlu0 %2835
        %2837 = vrot.lane.b32.xlu0 %v2759, 127
        %v2838 = vpop.permute.xlu0 %2837
        %2839 = vrot.lane.b32.xlu0 %v2752, 127
        %v2840 = vpop.permute.xlu0 %2839
        %2841 = vrot.lane.b32.xlu0 %v2766, 127
        %v2842 = vpop.permute.xlu0 %2841
        %v2843 = vsel %vm1378, %v2836, %v2840
        %v2844 = vsel %vm1378, %v2838, %v2842
        %v2845 = vsel %vm1378, %v2840, %v2836
        %v2846 = vsel %vm1378, %v2842, %v2838
        %v2851 = vcombine.low %v2843, %v2845
        %v2852 = vcombine.high %v2843, %v2845
        %v2853 = vcombine.low %v2844, %v2846
        %v2854 = vcombine.high %v2844, %v2846
        %v2855 = vrot.slane %v2851, 5
        %v2856 = vrot.slane %v2851, 6
        %v2857 = vrot.slane %v2851, 7
        %v2858 = vrot.slane %v2852, 5
        %v2859 = vrot.slane %v2852, 6
        %v2860 = vrot.slane %v2852, 7
        %v2861 = vrot.slane %v2853, 5
        %v2862 = vrot.slane %v2853, 6
        %v2863 = vrot.slane %v2853, 7
        %v2864 = vrot.slane %v2854, 5
        %v2865 = vrot.slane %v2854, 6
        %v2866 = vrot.slane %v2854, 7
        %v2883 = vsel %vm458, %v2855, 0.0
        %v2884 = vsel %vm458, %v2856, 0.0
        %v2885 = vsel %vm458, %v2857, 0.0
        %v2886 = vsel %vm458, %v2851, 0.0
        %v2887 = vsel %vm458, %v2858, 0.0
        %v2888 = vsel %vm458, %v2859, 0.0
        %v2889 = vsel %vm458, %v2860, 0.0
        %v2890 = vsel %vm458, %v2852, 0.0
        %v2891 = vsel %vm458, %v2861, 0.0
        %v2892 = vsel %vm458, %v2862, 0.0
        %v2893 = vsel %vm458, %v2863, 0.0
        %v2894 = vsel %vm458, %v2853, 0.0
        %v2895 = vsel %vm458, %v2864, 0.0
        %v2896 = vsel %vm458, %v2865, 0.0
        %v2897 = vsel %vm458, %v2866, 0.0
        %v2898 = vsel %vm458, %v2854, 0.0
        %2899 = vset.pattern.permute.xlu0 6
        %2900 = vperm.xlu0 %2899, %v440
        %v2901 = vpop.permute.xlu0 %2900
        %2902 = vset.pattern.permute.xlu0 6
        %2903 = vperm.xlu0 %2902, %v441
        %v2904 = vpop.permute.xlu0 %2903
        %v2906 = vunpack.c.l.s4 839922192
        %v2907 = vunpack.c.0.s8 %v2906
        %v2908 = vlaneseq
        %v2909 = vshrl.u32 %v2908, 7
        %v2910 = vsub.s32 %v2907, %v2909
        %v2911 = vrot.slane %v2901, %v2910
        %v2913 = vunpack.c.l.s4 1985246804
        %v2914 = vunpack.c.0.s8 %v2913
        %v2915 = vlaneseq
        %v2916 = vshrl.u32 %v2915, 7
        %v2917 = vsub.s32 %v2914, %v2916
        %v2918 = vrot.slane %v2901, %v2917
        %v2920 = vunpack.c.l.s4 839922192
        %v2921 = vunpack.c.0.s8 %v2920
        %v2922 = vlaneseq
        %v2923 = vshrl.u32 %v2922, 7
        %v2924 = vsub.s32 %v2921, %v2923
        %v2925 = vrot.slane %v2904, %v2924
        %v2927 = vunpack.c.l.s4 1985246804
        %v2928 = vunpack.c.0.s8 %v2927
        %v2929 = vlaneseq
        %v2930 = vshrl.u32 %v2929, 7
        %v2931 = vsub.s32 %v2928, %v2930
        %v2932 = vrot.slane %v2904, %v2931
        %v2933 = vrot.slane %v2911, 6
        %v2934 = vrot.slane %v2911, 7
        %v2935 = vrot.slane %v2911, 1
        %v2936 = vrot.slane %v2918, 6
        %v2937 = vrot.slane %v2918, 7
        %v2938 = vrot.slane %v2918, 1
        %v2939 = vrot.slane %v2925, 6
        %v2940 = vrot.slane %v2925, 7
        %v2941 = vrot.slane %v2925, 1
        %v2942 = vrot.slane %v2932, 6
        %v2943 = vrot.slane %v2932, 7
        %v2944 = vrot.slane %v2932, 1
        %v2961 = vmul.f32 %v2819, %v2933
        %v2962 = vmul.f32 %v2820, %v2934
        %v2963 = vmul.f32 %v2821, %v2911
        %v2964 = vmul.f32 %v2822, %v2935
        %v2965 = vmul.f32 %v2823, %v2936
        %v2966 = vmul.f32 %v2824, %v2937
        %v2967 = vmul.f32 %v2825, %v2918
        %v2968 = vmul.f32 %v2826, %v2938
        %v2969 = vmul.f32 %v2827, %v2939
        %v2970 = vmul.f32 %v2828, %v2940
        %v2971 = vmul.f32 %v2829, %v2925
        %v2972 = vmul.f32 %v2830, %v2941
        %v2973 = vmul.f32 %v2831, %v2942
        %v2974 = vmul.f32 %v2832, %v2943
        %v2975 = vmul.f32 %v2833, %v2932
        %v2976 = vmul.f32 %v2834, %v2944
        %v2993 = vlaneseq
        %v2994 = vshrl.u32 %v2993, 7
        %v2995 = vsub.s32 2, %v2994
        %v2996 = vrot.slane %v2961, %v2995
        %v2997 = vlaneseq
        %v2998 = vshrl.u32 %v2997, 7
        %v2999 = vsub.s32 6, %v2998
        %v3000 = vrot.slane %v2961, %v2999
        %v3001 = vlaneseq
        %v3002 = vshrl.u32 %v3001, 7
        %v3003 = vsub.s32 2, %v3002
        %v3004 = vrot.slane %v2962, %v3003
        %v3005 = vlaneseq
        %v3006 = vshrl.u32 %v3005, 7
        %v3007 = vsub.s32 6, %v3006
        %v3008 = vrot.slane %v2962, %v3007
        %v3009 = vlaneseq
        %v3010 = vshrl.u32 %v3009, 7
        %v3011 = vsub.s32 2, %v3010
        %v3012 = vrot.slane %v2963, %v3011
        %v3013 = vlaneseq
        %v3014 = vshrl.u32 %v3013, 7
        %v3015 = vsub.s32 6, %v3014
        %v3016 = vrot.slane %v2963, %v3015
        %v3017 = vlaneseq
        %v3018 = vshrl.u32 %v3017, 7
        %v3019 = vsub.s32 2, %v3018
        %v3020 = vrot.slane %v2964, %v3019
        %v3021 = vlaneseq
        %v3022 = vshrl.u32 %v3021, 7
        %v3023 = vsub.s32 6, %v3022
        %v3024 = vrot.slane %v2964, %v3023
        %v3025 = vlaneseq
        %v3026 = vshrl.u32 %v3025, 7
        %v3027 = vsub.s32 2, %v3026
        %v3028 = vrot.slane %v2965, %v3027
        %v3029 = vlaneseq
        %v3030 = vshrl.u32 %v3029, 7
        %v3031 = vsub.s32 6, %v3030
        %v3032 = vrot.slane %v2965, %v3031
        %v3033 = vlaneseq
        %v3034 = vshrl.u32 %v3033, 7
        %v3035 = vsub.s32 2, %v3034
        %v3036 = vrot.slane %v2966, %v3035
        %v3037 = vlaneseq
        %v3038 = vshrl.u32 %v3037, 7
        %v3039 = vsub.s32 6, %v3038
        %v3040 = vrot.slane %v2966, %v3039
        %v3041 = vlaneseq
        %v3042 = vshrl.u32 %v3041, 7
        %v3043 = vsub.s32 2, %v3042
        %v3044 = vrot.slane %v2967, %v3043
        %v3045 = vlaneseq
        %v3046 = vshrl.u32 %v3045, 7
        %v3047 = vsub.s32 6, %v3046
        %v3048 = vrot.slane %v2967, %v3047
        %v3049 = vlaneseq
        %v3050 = vshrl.u32 %v3049, 7
        %v3051 = vsub.s32 2, %v3050
        %v3052 = vrot.slane %v2968, %v3051
        %v3053 = vlaneseq
        %v3054 = vshrl.u32 %v3053, 7
        %v3055 = vsub.s32 6, %v3054
        %v3056 = vrot.slane %v2968, %v3055
        %v3057 = vlaneseq
        %v3058 = vshrl.u32 %v3057, 7
        %v3059 = vsub.s32 2, %v3058
        %v3060 = vrot.slane %v2969, %v3059
        %v3061 = vlaneseq
        %v3062 = vshrl.u32 %v3061, 7
        %v3063 = vsub.s32 6, %v3062
        %v3064 = vrot.slane %v2969, %v3063
        %v3065 = vlaneseq
        %v3066 = vshrl.u32 %v3065, 7
        %v3067 = vsub.s32 2, %v3066
        %v3068 = vrot.slane %v2970, %v3067
        %v3069 = vlaneseq
        %v3070 = vshrl.u32 %v3069, 7
        %v3071 = vsub.s32 6, %v3070
        %v3072 = vrot.slane %v2970, %v3071
        %v3073 = vlaneseq
        %v3074 = vshrl.u32 %v3073, 7
        %v3075 = vsub.s32 2, %v3074
        %v3076 = vrot.slane %v2971, %v3075
        %v3077 = vlaneseq
        %v3078 = vshrl.u32 %v3077, 7
        %v3079 = vsub.s32 6, %v3078
        %v3080 = vrot.slane %v2971, %v3079
        %v3081 = vlaneseq
        %v3082 = vshrl.u32 %v3081, 7
        %v3083 = vsub.s32 2, %v3082
        %v3084 = vrot.slane %v2972, %v3083
        %v3085 = vlaneseq
        %v3086 = vshrl.u32 %v3085, 7
        %v3087 = vsub.s32 6, %v3086
        %v3088 = vrot.slane %v2972, %v3087
        %v3089 = vlaneseq
        %v3090 = vshrl.u32 %v3089, 7
        %v3091 = vsub.s32 2, %v3090
        %v3092 = vrot.slane %v2973, %v3091
        %v3093 = vlaneseq
        %v3094 = vshrl.u32 %v3093, 7
        %v3095 = vsub.s32 6, %v3094
        %v3096 = vrot.slane %v2973, %v3095
        %v3097 = vlaneseq
        %v3098 = vshrl.u32 %v3097, 7
        %v3099 = vsub.s32 2, %v3098
        %v3100 = vrot.slane %v2974, %v3099
        %v3101 = vlaneseq
        %v3102 = vshrl.u32 %v3101, 7
        %v3103 = vsub.s32 6, %v3102
        %v3104 = vrot.slane %v2974, %v3103
        %v3105 = vlaneseq
        %v3106 = vshrl.u32 %v3105, 7
        %v3107 = vsub.s32 2, %v3106
        %v3108 = vrot.slane %v2975, %v3107
        %v3109 = vlaneseq
        %v3110 = vshrl.u32 %v3109, 7
        %v3111 = vsub.s32 6, %v3110
        %v3112 = vrot.slane %v2975, %v3111
        %v3113 = vlaneseq
        %v3114 = vshrl.u32 %v3113, 7
        %v3115 = vsub.s32 2, %v3114
        %v3116 = vrot.slane %v2976, %v3115
        %v3117 = vlaneseq
        %v3118 = vshrl.u32 %v3117, 7
        %v3119 = vsub.s32 6, %v3118
        %v3120 = vrot.slane %v2976, %v3119
        %v3121 = vsel %vm828, %v3004, %v2996
        %v3122 = vsel %vm830, %v3012, %v3121
        %v3123 = vsel %vm832, %v3020, %v3122
        %v3124 = vsel %vm834, %v3028, %v3123
        %v3125 = vsel %vm836, %v3036, %v3124
        %v3126 = vsel %vm838, %v3044, %v3125
        %v3127 = vsel %vm840, %v3052, %v3126
        %v3128 = vsel %vm828, %v3008, %v3000
        %v3129 = vsel %vm830, %v3016, %v3128
        %v3130 = vsel %vm832, %v3024, %v3129
        %v3131 = vsel %vm834, %v3032, %v3130
        %v3132 = vsel %vm836, %v3040, %v3131
        %v3133 = vsel %vm838, %v3048, %v3132
        %v3134 = vsel %vm840, %v3056, %v3133
        %v3135 = vsel %vm828, %v3068, %v3060
        %v3136 = vsel %vm830, %v3076, %v3135
        %v3137 = vsel %vm832, %v3084, %v3136
        %v3138 = vsel %vm834, %v3092, %v3137
        %v3139 = vsel %vm836, %v3100, %v3138
        %v3140 = vsel %vm838, %v3108, %v3139
        %v3141 = vsel %vm840, %v3116, %v3140
        %v3142 = vsel %vm828, %v3072, %v3064
        %v3143 = vsel %vm830, %v3080, %v3142
        %v3144 = vsel %vm832, %v3088, %v3143
        %v3145 = vsel %vm834, %v3096, %v3144
        %v3146 = vsel %vm836, %v3104, %v3145
        %v3147 = vsel %vm838, %v3112, %v3146
        %v3148 = vsel %vm840, %v3120, %v3147
        %v3153 = vadd.f32 %v2591, %v3127
        %v3154 = vadd.f32 %v2592, %v3134
        %v3155 = vadd.f32 %v2593, %v3141
        %v3156 = vadd.f32 %v2594, %v3148
        %3157 = vset.pattern.permute.xlu0 8
        %3158 = vperm.xlu0 %3157, %v440
        %v3159 = vpop.permute.xlu0 %3158
        %3160 = vset.pattern.permute.xlu0 8
        %3161 = vperm.xlu0 %3160, %v441
        %v3162 = vpop.permute.xlu0 %3161
        %v3164 = vunpack.c.l.s4 839922192
        %v3165 = vunpack.c.0.s8 %v3164
        %v3166 = vlaneseq
        %v3167 = vshrl.u32 %v3166, 7
        %v3168 = vsub.s32 %v3165, %v3167
        %v3169 = vrot.slane %v3159, %v3168
        %v3171 = vunpack.c.l.s4 1985246804
        %v3172 = vunpack.c.0.s8 %v3171
        %v3173 = vlaneseq
        %v3174 = vshrl.u32 %v3173, 7
        %v3175 = vsub.s32 %v3172, %v3174
        %v3176 = vrot.slane %v3159, %v3175
        %v3178 = vunpack.c.l.s4 839922192
        %v3179 = vunpack.c.0.s8 %v3178
        %v3180 = vlaneseq
        %v3181 = vshrl.u32 %v3180, 7
        %v3182 = vsub.s32 %v3179, %v3181
        %v3183 = vrot.slane %v3162, %v3182
        %v3185 = vunpack.c.l.s4 1985246804
        %v3186 = vunpack.c.0.s8 %v3185
        %v3187 = vlaneseq
        %v3188 = vshrl.u32 %v3187, 7
        %v3189 = vsub.s32 %v3186, %v3188
        %v3190 = vrot.slane %v3162, %v3189
        %v3191 = vrot.slane %v3169, 5
        %v3192 = vrot.slane %v3169, 6
        %v3193 = vrot.slane %v3169, 7
        %v3194 = vrot.slane %v3176, 5
        %v3195 = vrot.slane %v3176, 6
        %v3196 = vrot.slane %v3176, 7
        %v3197 = vrot.slane %v3183, 5
        %v3198 = vrot.slane %v3183, 6
        %v3199 = vrot.slane %v3183, 7
        %v3200 = vrot.slane %v3190, 5
        %v3201 = vrot.slane %v3190, 6
        %v3202 = vrot.slane %v3190, 7
        %v3219 = vmul.f32 %v2883, %v3191
        %v3220 = vmul.f32 %v2884, %v3192
        %v3221 = vmul.f32 %v2885, %v3193
        %v3222 = vmul.f32 %v2886, %v3169
        %v3223 = vmul.f32 %v2887, %v3194
        %v3224 = vmul.f32 %v2888, %v3195
        %v3225 = vmul.f32 %v2889, %v3196
        %v3226 = vmul.f32 %v2890, %v3176
        %v3227 = vmul.f32 %v2891, %v3197
        %v3228 = vmul.f32 %v2892, %v3198
        %v3229 = vmul.f32 %v2893, %v3199
        %v3230 = vmul.f32 %v2894, %v3183
        %v3231 = vmul.f32 %v2895, %v3200
        %v3232 = vmul.f32 %v2896, %v3201
        %v3233 = vmul.f32 %v2897, %v3202
        %v3234 = vmul.f32 %v2898, %v3190
        %v3251 = vlaneseq
        %v3252 = vshrl.u32 %v3251, 7
        %v3253 = vsub.s32 3, %v3252
        %v3254 = vrot.slane %v3219, %v3253
        %v3255 = vlaneseq
        %v3256 = vshrl.u32 %v3255, 7
        %v3257 = vsub.s32 7, %v3256
        %v3258 = vrot.slane %v3219, %v3257
        %v3259 = vlaneseq
        %v3260 = vshrl.u32 %v3259, 7
        %v3261 = vsub.s32 3, %v3260
        %v3262 = vrot.slane %v3220, %v3261
        %v3263 = vlaneseq
        %v3264 = vshrl.u32 %v3263, 7
        %v3265 = vsub.s32 7, %v3264
        %v3266 = vrot.slane %v3220, %v3265
        %v3267 = vlaneseq
        %v3268 = vshrl.u32 %v3267, 7
        %v3269 = vsub.s32 3, %v3268
        %v3270 = vrot.slane %v3221, %v3269
        %v3271 = vlaneseq
        %v3272 = vshrl.u32 %v3271, 7
        %v3273 = vsub.s32 7, %v3272
        %v3274 = vrot.slane %v3221, %v3273
        %v3275 = vlaneseq
        %v3276 = vshrl.u32 %v3275, 7
        %v3277 = vsub.s32 3, %v3276
        %v3278 = vrot.slane %v3222, %v3277
        %v3279 = vlaneseq
        %v3280 = vshrl.u32 %v3279, 7
        %v3281 = vsub.s32 7, %v3280
        %v3282 = vrot.slane %v3222, %v3281
        %v3283 = vlaneseq
        %v3284 = vshrl.u32 %v3283, 7
        %v3285 = vsub.s32 3, %v3284
        %v3286 = vrot.slane %v3223, %v3285
        %v3287 = vlaneseq
        %v3288 = vshrl.u32 %v3287, 7
        %v3289 = vsub.s32 7, %v3288
        %v3290 = vrot.slane %v3223, %v3289
        %v3291 = vlaneseq
        %v3292 = vshrl.u32 %v3291, 7
        %v3293 = vsub.s32 3, %v3292
        %v3294 = vrot.slane %v3224, %v3293
        %v3295 = vlaneseq
        %v3296 = vshrl.u32 %v3295, 7
        %v3297 = vsub.s32 7, %v3296
        %v3298 = vrot.slane %v3224, %v3297
        %v3299 = vlaneseq
        %v3300 = vshrl.u32 %v3299, 7
        %v3301 = vsub.s32 3, %v3300
        %v3302 = vrot.slane %v3225, %v3301
        %v3303 = vlaneseq
        %v3304 = vshrl.u32 %v3303, 7
        %v3305 = vsub.s32 7, %v3304
        %v3306 = vrot.slane %v3225, %v3305
        %v3307 = vlaneseq
        %v3308 = vshrl.u32 %v3307, 7
        %v3309 = vsub.s32 3, %v3308
        %v3310 = vrot.slane %v3226, %v3309
        %v3311 = vlaneseq
        %v3312 = vshrl.u32 %v3311, 7
        %v3313 = vsub.s32 7, %v3312
        %v3314 = vrot.slane %v3226, %v3313
        %v3315 = vlaneseq
        %v3316 = vshrl.u32 %v3315, 7
        %v3317 = vsub.s32 3, %v3316
        %v3318 = vrot.slane %v3227, %v3317
        %v3319 = vlaneseq
        %v3320 = vshrl.u32 %v3319, 7
        %v3321 = vsub.s32 7, %v3320
        %v3322 = vrot.slane %v3227, %v3321
        %v3323 = vlaneseq
        %v3324 = vshrl.u32 %v3323, 7
        %v3325 = vsub.s32 3, %v3324
        %v3326 = vrot.slane %v3228, %v3325
        %v3327 = vlaneseq
        %v3328 = vshrl.u32 %v3327, 7
        %v3329 = vsub.s32 7, %v3328
        %v3330 = vrot.slane %v3228, %v3329
        %v3331 = vlaneseq
        %v3332 = vshrl.u32 %v3331, 7
        %v3333 = vsub.s32 3, %v3332
        %v3334 = vrot.slane %v3229, %v3333
        %v3335 = vlaneseq
        %v3336 = vshrl.u32 %v3335, 7
        %v3337 = vsub.s32 7, %v3336
        %v3338 = vrot.slane %v3229, %v3337
        %v3339 = vlaneseq
        %v3340 = vshrl.u32 %v3339, 7
        %v3341 = vsub.s32 3, %v3340
        %v3342 = vrot.slane %v3230, %v3341
        %v3343 = vlaneseq
        %v3344 = vshrl.u32 %v3343, 7
        %v3345 = vsub.s32 7, %v3344
        %v3346 = vrot.slane %v3230, %v3345
        %v3347 = vlaneseq
        %v3348 = vshrl.u32 %v3347, 7
        %v3349 = vsub.s32 3, %v3348
        %v3350 = vrot.slane %v3231, %v3349
        %v3351 = vlaneseq
        %v3352 = vshrl.u32 %v3351, 7
        %v3353 = vsub.s32 7, %v3352
        %v3354 = vrot.slane %v3231, %v3353
        %v3355 = vlaneseq
        %v3356 = vshrl.u32 %v3355, 7
        %v3357 = vsub.s32 3, %v3356
        %v3358 = vrot.slane %v3232, %v3357
        %v3359 = vlaneseq
        %v3360 = vshrl.u32 %v3359, 7
        %v3361 = vsub.s32 7, %v3360
        %v3362 = vrot.slane %v3232, %v3361
        %v3363 = vlaneseq
        %v3364 = vshrl.u32 %v3363, 7
        %v3365 = vsub.s32 3, %v3364
        %v3366 = vrot.slane %v3233, %v3365
        %v3367 = vlaneseq
        %v3368 = vshrl.u32 %v3367, 7
        %v3369 = vsub.s32 7, %v3368
        %v3370 = vrot.slane %v3233, %v3369
        %v3371 = vlaneseq
        %v3372 = vshrl.u32 %v3371, 7
        %v3373 = vsub.s32 3, %v3372
        %v3374 = vrot.slane %v3234, %v3373
        %v3375 = vlaneseq
        %v3376 = vshrl.u32 %v3375, 7
        %v3377 = vsub.s32 7, %v3376
        %v3378 = vrot.slane %v3234, %v3377
        %v3379 = vsel %vm828, %v3262, %v3254
        %v3380 = vsel %vm830, %v3270, %v3379
        %v3381 = vsel %vm832, %v3278, %v3380
        %v3382 = vsel %vm834, %v3286, %v3381
        %v3383 = vsel %vm836, %v3294, %v3382
        %v3384 = vsel %vm838, %v3302, %v3383
        %v3385 = vsel %vm840, %v3310, %v3384
        %v3386 = vsel %vm828, %v3266, %v3258
        %v3387 = vsel %vm830, %v3274, %v3386
        %v3388 = vsel %vm832, %v3282, %v3387
        %v3389 = vsel %vm834, %v3290, %v3388
        %v3390 = vsel %vm836, %v3298, %v3389
        %v3391 = vsel %vm838, %v3306, %v3390
        %v3392 = vsel %vm840, %v3314, %v3391
        %v3393 = vsel %vm828, %v3326, %v3318
        %v3394 = vsel %vm830, %v3334, %v3393
        %v3395 = vsel %vm832, %v3342, %v3394
        %v3396 = vsel %vm834, %v3350, %v3395
        %v3397 = vsel %vm836, %v3358, %v3396
        %v3398 = vsel %vm838, %v3366, %v3397
        %v3399 = vsel %vm840, %v3374, %v3398
        %v3400 = vsel %vm828, %v3330, %v3322
        %v3401 = vsel %vm830, %v3338, %v3400
        %v3402 = vsel %vm832, %v3346, %v3401
        %v3403 = vsel %vm834, %v3354, %v3402
        %v3404 = vsel %vm836, %v3362, %v3403
        %v3405 = vsel %vm838, %v3370, %v3404
        %v3406 = vsel %vm840, %v3378, %v3405
        %v3411 = vadd.f32 %v3153, %v3385
        %v3412 = vadd.f32 %v3154, %v3392
        %v3413 = vadd.f32 %v3155, %v3399
        %v3414 = vadd.f32 %v3156, %v3406
        %v3415 = vxor.u32 %v3411, 2147483648
        %v3416 = vxor.u32 %v3412, 2147483648
        %v3417 = vxor.u32 %v3413, 2147483648
        %v3418 = vxor.u32 %v3414, 2147483648
        %v3419 = vmul.f32 %v3415, 1.442695
        %v3420 = vpow.pop %v3419
        %v3421 = vmul.f32 %v3416, 1.442695
        %v3422 = vpow.pop %v3421
        %v3423 = vmul.f32 %v3417, 1.442695
        %v3424 = vpow.pop %v3423
        %v3425 = vmul.f32 %v3418, 1.442695
        %v3426 = vpow.pop %v3425
        %v3427 = vadd.f32 %v3420, 1.0
        %v3428 = vadd.f32 %v3422, 1.0
        %v3429 = vadd.f32 %v3424, 1.0
        %v3430 = vadd.f32 %v3426, 1.0
        %v3431 = vrcp.pop %v3427
        %v3432 = vmul.f32 1.0, %v3431
        %v3433 = vrcp.pop %v3428
        %v3434 = vmul.f32 1.0, %v3433
        %v3435 = vrcp.pop %v3429
        %v3436 = vmul.f32 1.0, %v3435
        %v3437 = vrcp.pop %v3430
        %v3438 = vmul.f32 1.0, %v3437
        %v3439 = vmul.f32 %v3411, %v3432
        %v3440 = vmul.f32 %v3412, %v3434
        %v3441 = vmul.f32 %v3413, %v3436
        %v3442 = vmul.f32 %v3414, %v3438
        %v3443 = vld [vmem:[%s6] sm:$0xf]
        %v3444 = vld [vmem:[%s7] sm:$0xf]
        %3446 = vset.pattern.permute.xlu0 0
        %3447 = vperm.xlu0 %3446, %v3444
        %v3448 = vpop.permute.xlu0 %3447
        %vm3450 = vcmask 130048
        %v3452 = vsel %vm3450, %v3443, 0
        %3454 = vmatprep.subr.mxu0 0.0
        %3455 = vmatpush1.msra.mxu0 0.0
        %3456 = vmatprep.subr.mxu0 0.0
        %3457 = vmatpush1.msra.mxu0 0.0
        %3458 = vmatprep.subr.mxu0 0.0
        %3459 = vmatpush1.msra.mxu0 0.0
        %3460 = vmatprep.subr.mxu0 0.0
        %3461 = vmatpush1.msra.mxu0 0.0
        %3462 = vmatprep.subr.mxu0 0.0
        %3463 = vmatpush1.msra.mxu0 0.0
        %3464 = vmatprep.subr.mxu0 0.0
        %3465 = vmatpush1.msra.mxu0 0.0
        %3466 = vmatprep.subr.mxu0 0.0
        %3467 = vmatpush1.msra.mxu0 0.0
        %3468 = vmatprep.subr.mxu0 0.0
        %3469 = vmatpush1.msra.mxu0 0.0
        %3470 = vmatprep.subr.mxu0 0.0
        %3471 = vmatpush1.msra.mxu0 0.0
        %3472 = vmatprep.subr.mxu0 0.0
        %3473 = vmatpush1.msra.mxu0 0.0
        %3474 = vmatprep.subr.mxu0 0.0
        %3475 = vmatpush1.msra.mxu0 0.0
        %3476 = vmatprep.subr.mxu0 0.0
        %3477 = vmatpush1.msra.mxu0 0.0
        %3478 = vmatprep.subr.mxu0 0.0
        %3479 = vmatpush1.msra.mxu0 0.0
        %3480 = vmatprep.subr.mxu0 0.0
        %3481 = vmatpush1.msra.mxu0 0.0
        %3482 = vmatprep.subr.mxu0 %v3442
        %3483 = vmatpush1.msra.mxu0 %v3441
        %3484 = vmatprep.subr.mxu0 %v3440
        %3485 = vmatpush1.msra.mxu0 %v3439
        %3486 = vmatprep.subr.mxu0 0.0
        %3487 = vmatpush2.msra.mxu0 0.0
        %3488 = vmatprep.subr.mxu0 0.0
        %3489 = vmatpush2.msra.mxu0 0.0
        %3490 = vmatprep.subr.mxu0 0.0
        %3491 = vmatpush2.msra.mxu0 0.0
        %3492 = vmatprep.subr.mxu0 0.0
        %3493 = vmatpush2.msra.mxu0 0.0
        %3494 = vmatprep.subr.mxu0 0.0
        %3495 = vmatpush2.msra.mxu0 0.0
        %3496 = vmatprep.subr.mxu0 0.0
        %3497 = vmatpush2.msra.mxu0 0.0
        %3498 = vmatprep.subr.mxu0 0.0
        %3499 = vmatpush2.msra.mxu0 0.0
        %3500 = vmatprep.subr.mxu0 0.0
        %3501 = vmatpush2.msra.mxu0 0.0
        %3502 = vmatprep.subr.mxu0 0.0
        %3503 = vmatpush2.msra.mxu0 0.0
        %3504 = vmatprep.subr.mxu0 0.0
        %3505 = vmatpush2.msra.mxu0 0.0
        %3506 = vmatprep.subr.mxu0 0.0
        %3507 = vmatpush2.msra.mxu0 0.0
        %3508 = vmatprep.subr.mxu0 0.0
        %3509 = vmatpush2.msra.mxu0 0.0
        %3510 = vmatprep.subr.mxu0 0.0
        %3511 = vmatpush2.msra.mxu0 0.0
        %3512 = vmatprep.subr.mxu0 0.0
        %3513 = vmatpush2.msra.mxu0 0.0
        %3514 = vmatprep.subr.mxu0 0.0
        %3515 = vmatpush2.msra.mxu0 0.0
        %3516 = vmatprep.subr.mxu0 0.0
        %3517 = vmatpush2.msra.mxu0 0.0
        %3518 = vmatprep.mubr.f32.mxu0 0.0
        %3519 = vmatmul.mubr.f32.gmra.mxu0 %v3452
        %v3520 = vpop.f32.mrf.mxu0
        %v3521 = vadd.f32 %v3448, %v3520
        %v3522 = vpop.f32.mrf.mxu0
        %v3523 = vadd.f32 %v3448, %v3522
        %3524 = vdwg.mxu0
        %v3526 = vadd.f32 %v3521, %v304
        %v3527 = vadd.f32 %v3523, %v320
        %v3530 = vcombine.low %v3526, %v3527
        %3532 = vst [vmem:[%s298] sm:$0xff] %v3530
        %s3533 = sand.u32 %s203, 1
        %s3534 = scalar_lea.sflag [#allocation3], %s3533
        %s3535 = sand.u32 %s203, 1
        %s3536 = smul.addr %s3535, 8
        %s3537 = scalar_lea.vmem [#allocation2], %s3536
        // Predicated region
        $region53: #{tpu_custom_call.1} parent=51 // pred_check
          %p3538 = pneg %p213
        $region54: #{tpu_custom_call.1} parent=51 // pred_check_branch
          %3540 = sbr.rel (%p3538) target = $region56
        $region55: #{tpu_custom_call.1} parent=51 // pred_region
          %s3542 = ssub.s32 128, 128
          %3543 = vsyncadd %s3534, %s3542
          %s3544 = smul.addr %s22, 2
          %s3545 = smul.addr %s3544, 64
          %s3546 = scalar_lea.hbm %s8, %s3545
          %s3548 = sshll.u32 %s3537, 4
          %s3549 = int_to_ptr.vmem [resolvable:$true] %s3548
          %3551 = dma.vmem_to_hbm [thread:$0]  %s3549, 128, %s3546, %s3534
        $region56: #{tpu_custom_call.1} parent=51 // pred_fallthru
          _
      $region52: #{tpu_custom_call.1} parent=5 // pred_fallthru
        _
      %p3552 = scmp.le.s32.totalorder 2, %s17
      // Predicated region
      $region57: #{tpu_custom_call.1} parent=5 // pred_check
        %p3553 = pneg %p3552
      $region58: #{tpu_custom_call.1} parent=5 // pred_check_branch
        %3555 = sbr.rel (%p3553) target = $region60
      $region59: #{tpu_custom_call.1} parent=5 // pred_region
        %s3556 = ssub.s32 %s17, 2
        // Predicated region
        $region61: #{tpu_custom_call.1} parent=59 // pred_check
          %p3557 = pneg %p219
        $region62: #{tpu_custom_call.1} parent=59 // pred_check_branch
          %3559 = sbr.rel (%p3557) target = $region64
        $region63: #{tpu_custom_call.1} parent=59 // pred_region
          %s3560 = sand.u32 %s204, 1
          %s3561 = scalar_lea.sflag [#allocation3], %s3560
          %s3562 = sand.u32 %s204, 1
          %s3563 = smul.addr %s3562, 8
          %s3564 = scalar_lea.vmem [#allocation2], %s3563
          %3565 = dma.done %s3561, 128
        $region64: #{tpu_custom_call.1} parent=59 // pred_fallthru
          _
      $region60: #{tpu_custom_call.1} parent=5 // pred_fallthru
        _
    $region6: #{tpu_custom_call.1} parent=1 // loop_footer
      %s21 = sadd.s32 1, %s17
    $region7: #{tpu_custom_call.1} parent=1 // loop_footer_branch
      %16 = sbr.rel target = $region3
    $region8: #{tpu_custom_call.1} parent=1 // loop_exit
      _
    %3566 = vsyncpa [#allocation3], 1
    %s3567 = scalar_lea.sflag [#allocation3], 1
    %3568 = vsyncpa %s3567, 1

</llo_original>
